<compile_context>
chip_gen: v5e
topology: v5e:2x2
jax: 0.10.0
libtpu: 0.0.40
codegen_flags: <defaults>
</compile_context>

<pallas_src>
import functools

import jax
import jax.numpy as jnp
from jax.experimental import pallas as pl
from jax.experimental.pallas import tpu as pltpu


# ----------------------------------------------------------------------------
# VMEM limit (generation aware)
# ----------------------------------------------------------------------------
@functools.lru_cache(maxsize=None)
def _vmem_limit():
    try:
        cap = int(pltpu.get_tpu_info().vmem_capacity_bytes)
    except Exception:
        return 64 * 1024 * 1024
    return max(min(cap - 16 * 1024 * 1024, 112 * 1024 * 1024), 32 * 1024 * 1024)


# ----------------------------------------------------------------------------
# Pallas kernels
# ----------------------------------------------------------------------------
def _conv3d_kernel(*refs, H, W, D, fold_kw, has_res):
    """3x3x3 conv, one (possibly clamped) depth slice per grid step.

    Grid = (D, 3).  Axis 1 (kd) is the reduction axis; a single f32 VMEM
    scratch accumulates across it; bias, optional residual, per-channel GN
    statistics and the bf16 cast are fused into the finalize.  The H/W halo is
    built in a persistent VMEM slab (borders zeroed at t==0), so the activation
    never needs an HBM-side pad.
    """
    if has_res:
        x_ref, w_ref, b_ref, r_ref, o_ref, s_ref, xpad_ref, acc_ref = refs
    else:
        x_ref, w_ref, b_ref, o_ref, s_ref, xpad_ref, acc_ref = refs
        r_ref = None

    t = pl.program_id(1)
    src = pl.program_id(0) + t - 1                 # input depth this step reads
    valid = jnp.logical_and(src >= 0, src <= D - 1)

    @pl.when(t == 0)
    def _init():
        xpad_ref[...] = jnp.zeros_like(xpad_ref)   # halo stays zero afterwards
        acc_ref[...] = jnp.zeros_like(acc_ref)

    @pl.when(valid)
    def _accumulate():
        xpad_ref[1:H + 1, 1:W + 1, :] = x_ref[0]   # stage interior into halo slab
        for kh in range(3):
            if fold_kw:
                # Fold the 3 kw taps along channels: one K = 3*Cin matmul.
                tap = jnp.concatenate(
                    [xpad_ref[kh:kh + H, kw:kw + W, :] for kw in range(3)],
                    axis=-1)
                k = tap.shape[-1]
                acc_ref[...] += jnp.dot(tap.reshape(H * W, k),
                                        w_ref[t * 3 + kh],
                                        preferred_element_type=jnp.float32)
            else:
                # TODO(synk): pltpu.roll-based kw shift to avoid unaligned
                #             sublane slices on the small-channel layers.
                for kw in range(3):
                    tap = xpad_ref[kh:kh + H, kw:kw + W, :]
                    cin = tap.shape[-1]
                    acc_ref[...] += jnp.dot(tap.reshape(H * W, cin),
                                            w_ref[t * 3 + kh, kw],
                                            preferred_element_type=jnp.float32)

    @pl.when(t == pl.num_programs(1) - 1)
    def _finalize():
        out = acc_ref[...] + b_ref[...]
        if r_ref is not None:
            out = out + r_ref[0].astype(jnp.float32)
        # Fused GroupNorm statistics (per-depth-slice partials, f32).
        s_ref[0] = jnp.concatenate(
            [jnp.sum(out, axis=0, keepdims=True),
             jnp.sum(out * out, axis=0, keepdims=True)], axis=0)
        o_ref[0] = out.astype(o_ref.dtype)


def _pointwise_kernel(x_ref, w_ref, b_ref, o_ref):
    """1x1x1 conv: (tile_s, Cin) @ (Cin, Cout) + bias, spatially tiled."""
    y = jnp.dot(x_ref[...], w_ref[...], preferred_element_type=jnp.float32)
    o_ref[...] = (y + b_ref[...]).astype(o_ref.dtype)


def _gn_apply_kernel(x_ref, a_ref, b_ref, o_ref, *, silu):
    """Per-channel affine (precomputed GN scale/shift) + optional SiLU."""
    y = x_ref[...].astype(jnp.float32) * a_ref[...] + b_ref[...]
    if silu:
        y = y * (1.0 / (1.0 + jnp.exp(-y)))
    o_ref[...] = y.astype(o_ref.dtype)


# ----------------------------------------------------------------------------
# Pallas wrappers
# ----------------------------------------------------------------------------
def _pick_tile(s, max_tile=8192):
    """Largest row tile (multiple of 8) <= max_tile; prefers exact divisors."""
    if s <= max_tile:
        return s
    for t in range(max_tile, 7, -8):
        if s % t == 0:
            return t
    return max_tile  # ragged last block handled by the cdiv grid (elementwise)


def conv3d(x, w, b, res=None):
    """3x3x3 'same' conv + fused bias/residual/GN-stats.

    x:(D,H,W,Cin) any float dtype; w:(3,3,3,Cin,Cout); b:(Cout,);
    res: optional (D,H,W,Cout) added to the output (skip connection).
    Returns (out bf16 (D,H,W,Cout), stats f32 (D,2,Cout) per-depth sum/sumsq).
    """
    d, h, wd, cin = x.shape
    cout = w.shape[-1]
    hw = h * wd
    fold_kw = (cin % 128 == 0)

    xb = x.astype(jnp.bfloat16)
    wb = w.astype(jnp.bfloat16)
    if fold_kw:
        wk = wb.reshape(9, 3 * cin, cout)          # (kd*3+kh, kw*Cin+c, Cout)
        w_spec = pl.BlockSpec((9, 3 * cin, cout), lambda dd, t: (0, 0, 0))
    else:
        wk = wb.reshape(9, 3, cin, cout)
        w_spec = pl.BlockSpec((9, 3, cin, cout), lambda dd, t: (0, 0, 0, 0))
    bias = b.astype(jnp.float32).reshape(1, cout)

    def x_map(dd, t):
        # Clamp the depth index at the boundaries; the kernel gates validity.
        return (jnp.minimum(jnp.maximum(dd + t - 1, 0), d - 1), 0, 0, 0)

    in_specs = [pl.BlockSpec((1, h, wd, cin), x_map),
                w_spec,
                pl.BlockSpec((1, cout), lambda dd, t: (0, 0))]
    args = [xb, wk, bias]
    has_res = res is not None
    if has_res:
        in_specs.append(pl.BlockSpec((1, hw, cout), lambda dd, t: (dd, 0, 0)))
        args.append(res.reshape(d, hw, cout).astype(jnp.bfloat16))

    kernel = functools.partial(_conv3d_kernel, H=h, W=wd, D=d,
                               fold_kw=fold_kw, has_res=has_res)
    out, stats = pl.pallas_call(
        kernel,
        out_shape=(jax.ShapeDtypeStruct((d, hw, cout), jnp.bfloat16),
                   jax.ShapeDtypeStruct((d, 2, cout), jnp.float32)),
        grid=(d, 3),
        in_specs=in_specs,
        out_specs=(pl.BlockSpec((1, hw, cout), lambda dd, t: (dd, 0, 0)),
                   pl.BlockSpec((1, 2, cout), lambda dd, t: (dd, 0, 0))),
        scratch_shapes=[pltpu.VMEM((h + 2, wd + 2, cin), jnp.bfloat16),
                        pltpu.VMEM((hw, cout), jnp.float32)],
        compiler_params=pltpu.CompilerParams(
            dimension_semantics=("parallel", "arbitrary"),
            vmem_limit_bytes=_vmem_limit()),
    )(*args)
    return out.reshape(d, h, wd, cout), stats


def conv1x1(x, w, b):
    """1x1x1 conv.  x:(D,H,W,Cin); w:(1,1,1,Cin,Cout); b:(Cout,). Returns bf16."""
    d, h, wd, cin = x.shape
    cout = w.shape[-1]
    s = d * h * wd
    tile = _pick_tile(s)
    x2 = x.reshape(s, cin).astype(jnp.bfloat16)
    wk = w.reshape(cin, cout).astype(jnp.bfloat16)
    bias = b.astype(jnp.float32).reshape(1, cout)
    out = pl.pallas_call(
        _pointwise_kernel,
        out_shape=jax.ShapeDtypeStruct((s, cout), jnp.bfloat16),
        grid=(pl.cdiv(s, tile),),
        in_specs=[pl.BlockSpec((tile, cin), lambda i: (i, 0)),
                  pl.BlockSpec((cin, cout), lambda i: (0, 0)),
                  pl.BlockSpec((1, cout), lambda i: (0, 0))],
        out_specs=pl.BlockSpec((tile, cout), lambda i: (i, 0)),
        compiler_params=pltpu.CompilerParams(
            dimension_semantics=("parallel",),
            vmem_limit_bytes=_vmem_limit()),
    )(x2, wk, bias)
    return out.reshape(d, h, wd, cout)


def group_norm_silu(x, stats, gamma, beta, groups=32, eps=1e-6, silu=True):
    """GroupNorm(+SiLU) using conv-fused statistics.

    x: bf16 (D,H,W,C) (a conv3d output); stats: f32 (D,2,C) per-depth sum/sumsq.
    Single HBM pass (apply only); small C is lane-folded to full 128-lane rows.
    """
    d, h, w, c = x.shape
    s = d * h * w
    cg = c // groups

    # O(C) epilogue: fold depth partials + channel groups, build per-ch affine.
    tot = stats.sum(axis=0)                                  # (2, C)
    n = float(s * cg)
    gsum = tot[0].reshape(groups, cg).sum(axis=1)
    gsq = tot[1].reshape(groups, cg).sum(axis=1)
    mean = gsum / n
    var = jnp.maximum(gsq / n - mean * mean, 0.0)
    inv = jax.lax.rsqrt(var + eps)
    mean_c = jnp.repeat(mean, cg)
    inv_c = jnp.repeat(inv, cg)
    a = (gamma * inv_c).astype(jnp.float32)                  # (C,)
    bsh = (beta - mean_c * gamma * inv_c).astype(jnp.float32)

    x2 = x.reshape(s, c)
    if c < 128 and 128 % c == 0 and (s * c) % 128 == 0:
        f = 128 // c                                          # lane-fold small C
        x2 = x2.reshape(s * c // 128, 128)
        a2 = jnp.tile(a, f).reshape(1, 128)
        b2 = jnp.tile(bsh, f).reshape(1, 128)
    else:
        a2 = a.reshape(1, c)
        b2 = bsh.reshape(1, c)

    rows, cols = x2.shape
    tile = _pick_tile(rows)
    y = pl.pallas_call(
        functools.partial(_gn_apply_kernel, silu=silu),
        out_shape=jax.ShapeDtypeStruct((rows, cols), jnp.bfloat16),
        grid=(pl.cdiv(rows, tile),),
        in_specs=[pl.BlockSpec((tile, cols), lambda i: (i, 0)),
                  pl.BlockSpec((1, cols), lambda i: (0, 0)),
                  pl.BlockSpec((1, cols), lambda i: (0, 0))],
        out_specs=pl.BlockSpec((tile, cols), lambda i: (i, 0)),
        compiler_params=pltpu.CompilerParams(
            dimension_semantics=("parallel",),
            vmem_limit_bytes=_vmem_limit()),
    )(x2, a2, b2)
    return y.reshape(d, h, w, c)


def upsample_nearest_2x(x):
    """Nearest-neighbour x2 upsample of (D,H,W,C) in D, H, W (bf16 XLA glue)."""
    x = jnp.repeat(x, 2, axis=0)
    x = jnp.repeat(x, 2, axis=1)
    x = jnp.repeat(x, 2, axis=2)
    return x


# ----------------------------------------------------------------------------
# Decoder: parameters and forward pass
# ----------------------------------------------------------------------------
def _conv_init(key, k, cin, cout, zero=False):
    if zero:
        return (jnp.zeros((k, k, k, cin, cout), jnp.float32),
                jnp.zeros((cout,), jnp.float32))
    kw, kb = jax.random.split(key)
    fan_in = k * k * k * cin
    w = jax.random.normal(kw, (k, k, k, cin, cout), jnp.float32) / jnp.sqrt(float(fan_in))
    b = 0.01 * jax.random.normal(kb, (cout,), jnp.float32)
    return w, b


def _resblock_init(key, cin, cout, up):
    ks = jax.random.split(key, 3)
    p = {"up": up}
    p["g1"] = jnp.ones((cin,), jnp.float32)
    p["b1"] = jnp.zeros((cin,), jnp.float32)
    p["w1"], p["c1b"] = _conv_init(ks[0], 3, cin, cout)
    p["g2"] = jnp.ones((cout,), jnp.float32)
    p["b2"] = jnp.zeros((cout,), jnp.float32)
    p["w2"], p["c2b"] = _conv_init(ks[1], 3, cout, cout)
    if cin != cout:
        p["ws"], p["sb"] = _conv_init(ks[2], 1, cin, cout)
    return p


def init_decoder(key, channels_out, channels, channels_z, channel_mult=(2, 4), num_blocks=2):
    mult = [1] + list(channel_mult)
    cb = mult[-1] * channels
    keys = iter(jax.random.split(key, 64))
    params = {}
    params["proj_in_w"], params["proj_in_b"] = _conv_init(next(keys), 3, channels_z, cb)
    blocks = []
    for _ in range(num_blocks):
        blocks.append(_resblock_init(next(keys), cb, cb, False))
    for i in reversed(range(len(mult) - 1)):
        cb_i = mult[i] * channels
        ca_i = mult[i + 1] * channels
        blocks.append(_resblock_init(next(keys), ca_i, cb_i, True))
        for _ in range(num_blocks):
            blocks.append(_resblock_init(next(keys), cb_i, cb_i, False))
    params["blocks"] = blocks
    params["out_g"] = jnp.ones((channels,), jnp.float32)
    params["out_b"] = jnp.zeros((channels,), jnp.float32)
    # zero_init(Conv3D(...)) in the reference -> zero weights & bias.
    params["proj_out_w"], params["proj_out_b"] = _conv_init(
        next(keys), 3, channels, channels_out, zero=True)
    return params


def resnet_block(x, x_stats, p):
    h = group_norm_silu(x, x_stats, p["g1"], p["b1"], eps=1e-6, silu=True)
    if p["up"]:
        h = upsample_nearest_2x(h)
        # Pointwise conv commutes with nearest upsample: run the skip conv on
        # the small tensor, then upsample its output (8x less work/traffic).
        skip = conv1x1(x, p["ws"], p["sb"]) if "ws" in p else x
        skip = upsample_nearest_2x(skip)
    else:
        skip = conv1x1(x, p["ws"], p["sb"]) if "ws" in p else x
    h, h_stats = conv3d(h, p["w1"], p["c1b"])
    h = group_norm_silu(h, h_stats, p["g2"], p["b2"], eps=1e-6, silu=True)
    return conv3d(h, p["w2"], p["c2b"], res=skip)   # residual + GN stats fused


def decoder_forward(x_ncdhw, params):
    """x_ncdhw: (N, Cz, D, H, W) -> (N, Cout, 4D, 4H, 4W)."""
    outs = []
    for n in range(x_ncdhw.shape[0]):
        h = jnp.transpose(x_ncdhw[n], (1, 2, 3, 0))            # (D, H, W, Cz)
        h, st = conv3d(h, params["proj_in_w"], params["proj_in_b"])
        for blk in params["blocks"]:
            h, st = resnet_block(h, st, blk)
        h = group_norm_silu(h, st, params["out_g"], params["out_b"],
                            eps=1e-5, silu=True)
        h, _ = conv3d(h, params["proj_out_w"], params["proj_out_b"])
        outs.append(jnp.transpose(h.astype(jnp.float32), (3, 0, 1, 2)))
    return jnp.stack(outs, axis=0)


# ----------------------------------------------------------------------------
if __name__ == "__main__":
    key = jax.random.PRNGKey(0)
    kx, kp = jax.random.split(key)

    # --- small numeric self-check of the conv3d kernel against XLA's conv ----
    def _ref_conv(x, w, b):
        xr = x.astype(jnp.bfloat16).astype(jnp.float32)
        wr = w.astype(jnp.bfloat16).astype(jnp.float32)
        y = jax.lax.conv_general_dilated(
            xr[None], wr, window_strides=(1, 1, 1), padding="SAME",
            dimension_numbers=("NDHWC", "DHWIO", "NDHWC"))[0]
        return y + b.reshape(1, 1, 1, -1)

    kc = jax.random.split(jax.random.PRNGKey(1), 6)
    # small-channel (un-folded taps) path, with fused residual
    xt = jax.random.normal(kc[0], (3, 8, 8, 4), jnp.float32)
    wt = 0.1 * jax.random.normal(kc[1], (3, 3, 3, 4, 16), jnp.float32)
    bt = jnp.linspace(-0.5, 0.5, 16, dtype=jnp.float32)
    rt = jax.random.normal(kc[2], (3, 8, 8, 16), jnp.float32)
    yt, _ = conv3d(xt, wt, bt, res=rt)
    ref = _ref_conv(xt, wt, bt) + rt.astype(jnp.bfloat16).astype(jnp.float32)
    assert jnp.allclose(yt.astype(jnp.float32), ref, atol=0.05, rtol=0.02)
    # 128-channel (kw-folded, K=384) path
    xt = jax.random.normal(kc[3], (2, 8, 8, 128), jnp.float32)
    wt = 0.02 * jax.random.normal(kc[4], (3, 3, 3, 128, 32), jnp.float32)
    bt = 0.1 * jax.random.normal(kc[5], (32,), jnp.float32)
    yt, _ = conv3d(xt, wt, bt)
    ref = _ref_conv(xt, wt, bt)
    assert jnp.allclose(yt.astype(jnp.float32), ref, atol=0.08, rtol=0.02)

    # --- full decoder forward ------------------------------------------------
    channels_out, channels, channels_z = 3, 32, 4
    B, D, H, W = 1, 2, 4, 4

    x = jax.random.normal(kx, (B, channels_z, D, H, W), jnp.float32)
    params = init_decoder(kp, channels_out, channels, channels_z,
                          channel_mult=(2, 4), num_blocks=2)

    fwd = jax.jit(lambda inp: decoder_forward(inp, params))
    y = jax.block_until_ready(fwd(x))

    assert y.shape == (B, channels_out, D * 4, H * 4, W * 4), y.shape
    assert bool(jnp.all(jnp.isfinite(y)))
    print("KERNEL_OK")
</pallas_src>

<mosaic_0001>
module attributes {stable_mosaic.version = 11 : i64} {
  func.func @_conv3d_kernel(%arg0: i32, %arg1: i32, %arg2: memref<1x8x8x4xbf16, #tpu.memory_space<vmem>>, %arg3: memref<9x3x4x16xbf16, #tpu.memory_space<vmem>>, %arg4: memref<1x16xf32, #tpu.memory_space<vmem>>, %arg5: memref<1x64x16xbf16, #tpu.memory_space<vmem>>, %arg6: memref<1x64x16xbf16, #tpu.memory_space<vmem>>, %arg7: memref<1x2x16xf32, #tpu.memory_space<vmem>>, %arg8: memref<10x10x4xbf16, #tpu.memory_space<vmem>>, %arg9: memref<64x16xf32, #tpu.memory_space<vmem>>) attributes {dimension_semantics = [#tpu.dimension_semantics<parallel>, #tpu.dimension_semantics<arbitrary>], iteration_bounds = array<i64: 3, 3>, scalar_prefetch = 0 : i64, scratch_operands = 2 : i64, tpu.core_type = #tpu.core_type<tc>, window_params = [{transform_indices = @transform_0, window_bounds = array<i64: 1, 8, 8, 4>}, {pipeline_mode = #tpu.pipeline_mode<synchronous>, transform_indices = @transform_1, window_bounds = array<i64: 9, 3, 4, 16>}, {pipeline_mode = #tpu.pipeline_mode<synchronous>, transform_indices = @transform_2, window_bounds = array<i64: 1, 16>}, {transform_indices = @transform_3, window_bounds = array<i64: 1, 64, 16>}, {transform_indices = @transform_4, window_bounds = array<i64: 1, 64, 16>}, {transform_indices = @transform_5, window_bounds = array<i64: 1, 2, 16>}]} {
    %0 = arith.addi %arg0, %arg1 : i32
    %c1_i32 = arith.constant 1 : i32
    %1 = arith.subi %0, %c1_i32 : i32
    %c0_i32 = arith.constant 0 : i32
    %2 = arith.cmpi sge, %1, %c0_i32 : i32
    %c2_i32 = arith.constant 2 : i32
    %3 = arith.cmpi sle, %1, %c2_i32 : i32
    %4 = arith.andi %2, %3 : i1
    %c0_i32_0 = arith.constant 0 : i32
    %5 = arith.cmpi eq, %arg1, %c0_i32_0 : i32
    %6 = arith.extui %5 : i1 to i32
    %c0_i32_1 = arith.constant 0 : i32
    %7 = arith.cmpi ne, %6, %c0_i32_1 : i32
    scf.if %7 {
      %cst = arith.constant 0.000000e+00 : bf16
      %13 = vector.broadcast %cst : bf16 to vector<10x10x4xbf16>
      %c0 = arith.constant 0 : index
      %c0_5 = arith.constant 0 : index
      %c0_6 = arith.constant 0 : index
      %14 = vector.load %arg8[%c0, %c0_5, %c0_6] : memref<10x10x4xbf16, #tpu.memory_space<vmem>>, vector<10x10x4xbf16>
      tpu.vector_store %arg8[%c0, %c0_5, %c0_6], %13 {strides = array<i32>} : memref<10x10x4xbf16, #tpu.memory_space<vmem>>, vector<10x10x4xbf16>,
      %cst_7 = arith.constant 0.000000e+00 : f32
      %15 = vector.broadcast %cst_7 : f32 to vector<64x16xf32>
      %c0_8 = arith.constant 0 : index
      %c0_9 = arith.constant 0 : index
      %16 = vector.load %arg9[%c0_8, %c0_9] : memref<64x16xf32, #tpu.memory_space<vmem>>, vector<64x16xf32>
      tpu.vector_store %arg9[%c0_8, %c0_9], %15 {strides = array<i32>} : memref<64x16xf32, #tpu.memory_space<vmem>>, vector<64x16xf32>,
    } else {
    }
    %8 = arith.extui %4 : i1 to i32
    %c0_i32_2 = arith.constant 0 : i32
    %9 = arith.cmpi ne, %8, %c0_i32_2 : i32
    scf.if %9 {
      %c0 = arith.constant 0 : index
      %c0_5 = arith.constant 0 : index
      %c0_6 = arith.constant 0 : index
      %c0_7 = arith.constant 0 : index
      %13 = vector.load %arg2[%c0, %c0_5, %c0_6, %c0_7] : memref<1x8x8x4xbf16, #tpu.memory_space<vmem>>, vector<1x8x8x4xbf16>
      %14 = vector.shape_cast %13 : vector<1x8x8x4xbf16> to vector<8x8x4xbf16>
      %c1 = arith.constant 1 : index
      %c1_8 = arith.constant 1 : index
      %c0_9 = arith.constant 0 : index
      %15 = vector.load %arg8[%c1, %c1_8, %c0_9] : memref<10x10x4xbf16, #tpu.memory_space<vmem>>, vector<8x8x4xbf16>
      tpu.vector_store %arg8[%c1, %c1_8, %c0_9], %14 {strides = array<i32>} : memref<10x10x4xbf16, #tpu.memory_space<vmem>>, vector<8x8x4xbf16>,
      %c0_10 = arith.constant 0 : index
      %c0_11 = arith.constant 0 : index
      %c0_12 = arith.constant 0 : index
      %16 = vector.load %arg8[%c0_10, %c0_11, %c0_12] : memref<10x10x4xbf16, #tpu.memory_space<vmem>>, vector<8x8x4xbf16>
      %c0_13 = arith.constant 0 : index
      %c0_14 = arith.constant 0 : index
      %17 = vector.load %arg9[%c0_13, %c0_14] : memref<64x16xf32, #tpu.memory_space<vmem>>, vector<64x16xf32>
      %18 = vector.shape_cast %16 : vector<8x8x4xbf16> to vector<64x4xbf16>
      %c3_i32 = arith.constant 3 : i32
      %19 = arith.muli %arg1, %c3_i32 : i32
      %c0_i32_15 = arith.constant 0 : i32
      %20 = arith.addi %19, %c0_i32_15 : i32
      %21 = arith.index_cast %20 : i32 to index
      %c0_16 = arith.constant 0 : index
      %c0_17 = arith.constant 0 : index
      %c0_18 = arith.constant 0 : index
      %22 = vector.load %arg3[%21, %c0_16, %c0_17, %c0_18] : memref<9x3x4x16xbf16, #tpu.memory_space<vmem>>, vector<1x1x4x16xbf16>
      %23 = vector.shape_cast %22 : vector<1x1x4x16xbf16> to vector<4x16xbf16>
      %cst = arith.constant dense<0.000000e+00> : vector<64x16xf32>
      %24 = tpu.matmul %18, %23, %cst {dimension_numbers = #tpu.dot_dimension_numbers<[1], [0], [0], [1], [0, 0, 1, 1], [], []>} : vector<64x4xbf16>, vector<4x16xbf16>, vector<64x16xf32> -> vector<64x16xf32>
      %25 = arith.addf %17, %24 : vector<64x16xf32>
      %c0_19 = arith.constant 0 : index
      %c0_20 = arith.constant 0 : index
      %26 = vector.load %arg9[%c0_19, %c0_20] : memref<64x16xf32, #tpu.memory_space<vmem>>, vector<64x16xf32>
      tpu.vector_store %arg9[%c0_19, %c0_20], %25 {strides = array<i32>} : memref<64x16xf32, #tpu.memory_space<vmem>>, vector<64x16xf32>,
      %c0_21 = arith.constant 0 : index
      %c1_22 = arith.constant 1 : index
      %c0_23 = arith.constant 0 : index
      %27 = vector.load %arg8[%c0_21, %c1_22, %c0_23] : memref<10x10x4xbf16, #tpu.memory_space<vmem>>, vector<8x8x4xbf16>
      %c0_24 = arith.constant 0 : index
      %c0_25 = arith.constant 0 : index
      %28 = vector.load %arg9[%c0_24, %c0_25] : memref<64x16xf32, #tpu.memory_space<vmem>>, vector<64x16xf32>
      %29 = vector.shape_cast %27 : vector<8x8x4xbf16> to vector<64x4xbf16>
      %c3_i32_26 = arith.constant 3 : i32
      %30 = arith.muli %arg1, %c3_i32_26 : i32
      %c0_i32_27 = arith.constant 0 : i32
      %31 = arith.addi %30, %c0_i32_27 : i32
      %32 = arith.index_cast %31 : i32 to index
      %c1_28 = arith.constant 1 : index
      %c0_29 = arith.constant 0 : index
      %c0_30 = arith.constant 0 : index
      %33 = vector.load %arg3[%32, %c1_28, %c0_29, %c0_30] : memref<9x3x4x16xbf16, #tpu.memory_space<vmem>>, vector<1x1x4x16xbf16>
      %34 = vector.shape_cast %33 : vector<1x1x4x16xbf16> to vector<4x16xbf16>
      %cst_31 = arith.constant dense<0.000000e+00> : vector<64x16xf32>
      %35 = tpu.matmul %29, %34, %cst_31 {dimension_numbers = #tpu.dot_dimension_numbers<[1], [0], [0], [1], [0, 0, 1, 1], [], []>} : vector<64x4xbf16>, vector<4x16xbf16>, vector<64x16xf32> -> vector<64x16xf32>
      %36 = arith.addf %28, %35 : vector<64x16xf32>
      %c0_32 = arith.constant 0 : index
      %c0_33 = arith.constant 0 : index
      %37 = vector.load %arg9[%c0_32, %c0_33] : memref<64x16xf32, #tpu.memory_space<vmem>>, vector<64x16xf32>
      tpu.vector_store %arg9[%c0_32, %c0_33], %36 {strides = array<i32>} : memref<64x16xf32, #tpu.memory_space<vmem>>, vector<64x16xf32>,
      %c0_34 = arith.constant 0 : index
      %c2 = arith.constant 2 : index
      %c0_35 = arith.constant 0 : index
      %38 = vector.load %arg8[%c0_34, %c2, %c0_35] : memref<10x10x4xbf16, #tpu.memory_space<vmem>>, vector<8x8x4xbf16>
      %c0_36 = arith.constant 0 : index
      %c0_37 = arith.constant 0 : index
      %39 = vector.load %arg9[%c0_36, %c0_37] : memref<64x16xf32, #tpu.memory_space<vmem>>, vector<64x16xf32>
      %40 = vector.shape_cast %38 : vector<8x8x4xbf16> to vector<64x4xbf16>
      %c3_i32_38 = arith.constant 3 : i32
      %41 = arith.muli %arg1, %c3_i32_38 : i32
      %c0_i32_39 = arith.constant 0 : i32
      %42 = arith.addi %41, %c0_i32_39 : i32
      %43 = arith.index_cast %42 : i32 to index
      %c2_40 = arith.constant 2 : index
      %c0_41 = arith.constant 0 : index
      %c0_42 = arith.constant 0 : index
      %44 = vector.load %arg3[%43, %c2_40, %c0_41, %c0_42] : memref<9x3x4x16xbf16, #tpu.memory_space<vmem>>, vector<1x1x4x16xbf16>
      %45 = vector.shape_cast %44 : vector<1x1x4x16xbf16> to vector<4x16xbf16>
      %cst_43 = arith.constant dense<0.000000e+00> : vector<64x16xf32>
      %46 = tpu.matmul %40, %45, %cst_43 {dimension_numbers = #tpu.dot_dimension_numbers<[1], [0], [0], [1], [0, 0, 1, 1], [], []>} : vector<64x4xbf16>, vector<4x16xbf16>, vector<64x16xf32> -> vector<64x16xf32>
      %47 = arith.addf %39, %46 : vector<64x16xf32>
      %c0_44 = arith.constant 0 : index
      %c0_45 = arith.constant 0 : index
      %48 = vector.load %arg9[%c0_44, %c0_45] : memref<64x16xf32, #tpu.memory_space<vmem>>, vector<64x16xf32>
      tpu.vector_store %arg9[%c0_44, %c0_45], %47 {strides = array<i32>} : memref<64x16xf32, #tpu.memory_space<vmem>>, vector<64x16xf32>,
      %c1_46 = arith.constant 1 : index
      %c0_47 = arith.constant 0 : index
      %c0_48 = arith.constant 0 : index
      %49 = vector.load %arg8[%c1_46, %c0_47, %c0_48] : memref<10x10x4xbf16, #tpu.memory_space<vmem>>, vector<8x8x4xbf16>
      %c0_49 = arith.constant 0 : index
      %c0_50 = arith.constant 0 : index
      %50 = vector.load %arg9[%c0_49, %c0_50] : memref<64x16xf32, #tpu.memory_space<vmem>>, vector<64x16xf32>
      %51 = vector.shape_cast %49 : vector<8x8x4xbf16> to vector<64x4xbf16>
      %c3_i32_51 = arith.constant 3 : i32
      %52 = arith.muli %arg1, %c3_i32_51 : i32
      %c1_i32_52 = arith.constant 1 : i32
      %53 = arith.addi %52, %c1_i32_52 : i32
      %54 = arith.index_cast %53 : i32 to index
      %c0_53 = arith.constant 0 : index
      %c0_54 = arith.constant 0 : index
      %c0_55 = arith.constant 0 : index
      %55 = vector.load %arg3[%54, %c0_53, %c0_54, %c0_55] : memref<9x3x4x16xbf16, #tpu.memory_space<vmem>>, vector<1x1x4x16xbf16>
      %56 = vector.shape_cast %55 : vector<1x1x4x16xbf16> to vector<4x16xbf16>
      %cst_56 = arith.constant dense<0.000000e+00> : vector<64x16xf32>
      %57 = tpu.matmul %51, %56, %cst_56 {dimension_numbers = #tpu.dot_dimension_numbers<[1], [0], [0], [1], [0, 0, 1, 1], [], []>} : vector<64x4xbf16>, vector<4x16xbf16>, vector<64x16xf32> -> vector<64x16xf32>
      %58 = arith.addf %50, %57 : vector<64x16xf32>
      %c0_57 = arith.constant 0 : index
      %c0_58 = arith.constant 0 : index
      %59 = vector.load %arg9[%c0_57, %c0_58] : memref<64x16xf32, #tpu.memory_space<vmem>>, vector<64x16xf32>
      tpu.vector_store %arg9[%c0_57, %c0_58], %58 {strides = array<i32>} : memref<64x16xf32, #tpu.memory_space<vmem>>, vector<64x16xf32>,
      %c1_59 = arith.constant 1 : index
      %c1_60 = arith.constant 1 : index
      %c0_61 = arith.constant 0 : index
      %60 = vector.load %arg8[%c1_59, %c1_60, %c0_61] : memref<10x10x4xbf16, #tpu.memory_space<vmem>>, vector<8x8x4xbf16>
      %c0_62 = arith.constant 0 : index
      %c0_63 = arith.constant 0 : index
      %61 = vector.load %arg9[%c0_62, %c0_63] : memref<64x16xf32, #tpu.memory_space<vmem>>, vector<64x16xf32>
      %62 = vector.shape_cast %60 : vector<8x8x4xbf16> to vector<64x4xbf16>
      %c3_i32_64 = arith.constant 3 : i32
      %63 = arith.muli %arg1, %c3_i32_64 : i32
      %c1_i32_65 = arith.constant 1 : i32
      %64 = arith.addi %63, %c1_i32_65 : i32
      %65 = arith.index_cast %64 : i32 to index
      %c1_66 = arith.constant 1 : index
      %c0_67 = arith.constant 0 : index
      %c0_68 = arith.constant 0 : index
      %66 = vector.load %arg3[%65, %c1_66, %c0_67, %c0_68] : memref<9x3x4x16xbf16, #tpu.memory_space<vmem>>, vector<1x1x4x16xbf16>
      %67 = vector.shape_cast %66 : vector<1x1x4x16xbf16> to vector<4x16xbf16>
      %cst_69 = arith.constant dense<0.000000e+00> : vector<64x16xf32>
      %68 = tpu.matmul %62, %67, %cst_69 {dimension_numbers = #tpu.dot_dimension_numbers<[1], [0], [0], [1], [0, 0, 1, 1], [], []>} : vector<64x4xbf16>, vector<4x16xbf16>, vector<64x16xf32> -> vector<64x16xf32>
      %69 = arith.addf %61, %68 : vector<64x16xf32>
      %c0_70 = arith.constant 0 : index
      %c0_71 = arith.constant 0 : index
      %70 = vector.load %arg9[%c0_70, %c0_71] : memref<64x16xf32, #tpu.memory_space<vmem>>, vector<64x16xf32>
      tpu.vector_store %arg9[%c0_70, %c0_71], %69 {strides = array<i32>} : memref<64x16xf32, #tpu.memory_space<vmem>>, vector<64x16xf32>,
      %c1_72 = arith.constant 1 : index
      %c2_73 = arith.constant 2 : index
      %c0_74 = arith.constant 0 : index
      %71 = vector.load %arg8[%c1_72, %c2_73, %c0_74] : memref<10x10x4xbf16, #tpu.memory_space<vmem>>, vector<8x8x4xbf16>
      %c0_75 = arith.constant 0 : index
      %c0_76 = arith.constant 0 : index
      %72 = vector.load %arg9[%c0_75, %c0_76] : memref<64x16xf32, #tpu.memory_space<vmem>>, vector<64x16xf32>
      %73 = vector.shape_cast %71 : vector<8x8x4xbf16> to vector<64x4xbf16>
      %c3_i32_77 = arith.constant 3 : i32
      %74 = arith.muli %arg1, %c3_i32_77 : i32
      %c1_i32_78 = arith.constant 1 : i32
      %75 = arith.addi %74, %c1_i32_78 : i32
      %76 = arith.index_cast %75 : i32 to index
      %c2_79 = arith.constant 2 : index
      %c0_80 = arith.constant 0 : index
      %c0_81 = arith.constant 0 : index
      %77 = vector.load %arg3[%76, %c2_79, %c0_80, %c0_81] : memref<9x3x4x16xbf16, #tpu.memory_space<vmem>>, vector<1x1x4x16xbf16>
      %78 = vector.shape_cast %77 : vector<1x1x4x16xbf16> to vector<4x16xbf16>
      %cst_82 = arith.constant dense<0.000000e+00> : vector<64x16xf32>
      %79 = tpu.matmul %73, %78, %cst_82 {dimension_numbers = #tpu.dot_dimension_numbers<[1], [0], [0], [1], [0, 0, 1, 1], [], []>} : vector<64x4xbf16>, vector<4x16xbf16>, vector<64x16xf32> -> vector<64x16xf32>
      %80 = arith.addf %72, %79 : vector<64x16xf32>
      %c0_83 = arith.constant 0 : index
      %c0_84 = arith.constant 0 : index
      %81 = vector.load %arg9[%c0_83, %c0_84] : memref<64x16xf32, #tpu.memory_space<vmem>>, vector<64x16xf32>
      tpu.vector_store %arg9[%c0_83, %c0_84], %80 {strides = array<i32>} : memref<64x16xf32, #tpu.memory_space<vmem>>, vector<64x16xf32>,
      %c2_85 = arith.constant 2 : index
      %c0_86 = arith.constant 0 : index
      %c0_87 = arith.constant 0 : index
      %82 = vector.load %arg8[%c2_85, %c0_86, %c0_87] : memref<10x10x4xbf16, #tpu.memory_space<vmem>>, vector<8x8x4xbf16>
      %c0_88 = arith.constant 0 : index
      %c0_89 = arith.constant 0 : index
      %83 = vector.load %arg9[%c0_88, %c0_89] : memref<64x16xf32, #tpu.memory_space<vmem>>, vector<64x16xf32>
      %84 = vector.shape_cast %82 : vector<8x8x4xbf16> to vector<64x4xbf16>
      %c3_i32_90 = arith.constant 3 : i32
      %85 = arith.muli %arg1, %c3_i32_90 : i32
      %c2_i32_91 = arith.constant 2 : i32
      %86 = arith.addi %85, %c2_i32_91 : i32
      %87 = arith.index_cast %86 : i32 to index
      %c0_92 = arith.constant 0 : index
      %c0_93 = arith.constant 0 : index
      %c0_94 = arith.constant 0 : index
      %88 = vector.load %arg3[%87, %c0_92, %c0_93, %c0_94] : memref<9x3x4x16xbf16, #tpu.memory_space<vmem>>, vector<1x1x4x16xbf16>
      %89 = vector.shape_cast %88 : vector<1x1x4x16xbf16> to vector<4x16xbf16>
      %cst_95 = arith.constant dense<0.000000e+00> : vector<64x16xf32>
      %90 = tpu.matmul %84, %89, %cst_95 {dimension_numbers = #tpu.dot_dimension_numbers<[1], [0], [0], [1], [0, 0, 1, 1], [], []>} : vector<64x4xbf16>, vector<4x16xbf16>, vector<64x16xf32> -> vector<64x16xf32>
      %91 = arith.addf %83, %90 : vector<64x16xf32>
      %c0_96 = arith.constant 0 : index
      %c0_97 = arith.constant 0 : index
      %92 = vector.load %arg9[%c0_96, %c0_97] : memref<64x16xf32, #tpu.memory_space<vmem>>, vector<64x16xf32>
      tpu.vector_store %arg9[%c0_96, %c0_97], %91 {strides = array<i32>} : memref<64x16xf32, #tpu.memory_space<vmem>>, vector<64x16xf32>,
      %c2_98 = arith.constant 2 : index
      %c1_99 = arith.constant 1 : index
      %c0_100 = arith.constant 0 : index
      %93 = vector.load %arg8[%c2_98, %c1_99, %c0_100] : memref<10x10x4xbf16, #tpu.memory_space<vmem>>, vector<8x8x4xbf16>
      %c0_101 = arith.constant 0 : index
      %c0_102 = arith.constant 0 : index
      %94 = vector.load %arg9[%c0_101, %c0_102] : memref<64x16xf32, #tpu.memory_space<vmem>>, vector<64x16xf32>
      %95 = vector.shape_cast %93 : vector<8x8x4xbf16> to vector<64x4xbf16>
      %c3_i32_103 = arith.constant 3 : i32
      %96 = arith.muli %arg1, %c3_i32_103 : i32
      %c2_i32_104 = arith.constant 2 : i32
      %97 = arith.addi %96, %c2_i32_104 : i32
      %98 = arith.index_cast %97 : i32 to index
      %c1_105 = arith.constant 1 : index
      %c0_106 = arith.constant 0 : index
      %c0_107 = arith.constant 0 : index
      %99 = vector.load %arg3[%98, %c1_105, %c0_106, %c0_107] : memref<9x3x4x16xbf16, #tpu.memory_space<vmem>>, vector<1x1x4x16xbf16>
      %100 = vector.shape_cast %99 : vector<1x1x4x16xbf16> to vector<4x16xbf16>
      %cst_108 = arith.constant dense<0.000000e+00> : vector<64x16xf32>
      %101 = tpu.matmul %95, %100, %cst_108 {dimension_numbers = #tpu.dot_dimension_numbers<[1], [0], [0], [1], [0, 0, 1, 1], [], []>} : vector<64x4xbf16>, vector<4x16xbf16>, vector<64x16xf32> -> vector<64x16xf32>
      %102 = arith.addf %94, %101 : vector<64x16xf32>
      %c0_109 = arith.constant 0 : index
      %c0_110 = arith.constant 0 : index
      %103 = vector.load %arg9[%c0_109, %c0_110] : memref<64x16xf32, #tpu.memory_space<vmem>>, vector<64x16xf32>
      tpu.vector_store %arg9[%c0_109, %c0_110], %102 {strides = array<i32>} : memref<64x16xf32, #tpu.memory_space<vmem>>, vector<64x16xf32>,
      %c2_111 = arith.constant 2 : index
      %c2_112 = arith.constant 2 : index
      %c0_113 = arith.constant 0 : index
      %104 = vector.load %arg8[%c2_111, %c2_112, %c0_113] : memref<10x10x4xbf16, #tpu.memory_space<vmem>>, vector<8x8x4xbf16>
      %c0_114 = arith.constant 0 : index
      %c0_115 = arith.constant 0 : index
      %105 = vector.load %arg9[%c0_114, %c0_115] : memref<64x16xf32, #tpu.memory_space<vmem>>, vector<64x16xf32>
      %106 = vector.shape_cast %104 : vector<8x8x4xbf16> to vector<64x4xbf16>
      %c3_i32_116 = arith.constant 3 : i32
      %107 = arith.muli %arg1, %c3_i32_116 : i32
      %c2_i32_117 = arith.constant 2 : i32
      %108 = arith.addi %107, %c2_i32_117 : i32
      %109 = arith.index_cast %108 : i32 to index
      %c2_118 = arith.constant 2 : index
      %c0_119 = arith.constant 0 : index
      %c0_120 = arith.constant 0 : index
      %110 = vector.load %arg3[%109, %c2_118, %c0_119, %c0_120] : memref<9x3x4x16xbf16, #tpu.memory_space<vmem>>, vector<1x1x4x16xbf16>
      %111 = vector.shape_cast %110 : vector<1x1x4x16xbf16> to vector<4x16xbf16>
      %cst_121 = arith.constant dense<0.000000e+00> : vector<64x16xf32>
      %112 = tpu.matmul %106, %111, %cst_121 {dimension_numbers = #tpu.dot_dimension_numbers<[1], [0], [0], [1], [0, 0, 1, 1], [], []>} : vector<64x4xbf16>, vector<4x16xbf16>, vector<64x16xf32> -> vector<64x16xf32>
      %113 = arith.addf %105, %112 : vector<64x16xf32>
      %c0_122 = arith.constant 0 : index
      %c0_123 = arith.constant 0 : index
      %114 = vector.load %arg9[%c0_122, %c0_123] : memref<64x16xf32, #tpu.memory_space<vmem>>, vector<64x16xf32>
      tpu.vector_store %arg9[%c0_122, %c0_123], %113 {strides = array<i32>} : memref<64x16xf32, #tpu.memory_space<vmem>>, vector<64x16xf32>,
    } else {
    }
    %c2_i32_3 = arith.constant 2 : i32
    %10 = arith.cmpi eq, %arg1, %c2_i32_3 : i32
    %11 = arith.extui %10 : i1 to i32
    %c0_i32_4 = arith.constant 0 : i32
    %12 = arith.cmpi ne, %11, %c0_i32_4 : i32
    scf.if %12 {
      %c0 = arith.constant 0 : index
      %c0_5 = arith.constant 0 : index
      %13 = vector.load %arg9[%c0, %c0_5] : memref<64x16xf32, #tpu.memory_space<vmem>>, vector<64x16xf32>
      %c0_6 = arith.constant 0 : index
      %c0_7 = arith.constant 0 : index
      %14 = vector.load %arg4[%c0_6, %c0_7] : memref<1x16xf32, #tpu.memory_space<vmem>>, vector<1x16xf32>
      %15 = vector.broadcast %14 : vector<1x16xf32> to vector<64x16xf32>
      %16 = arith.addf %13, %15 : vector<64x16xf32>
      %c0_8 = arith.constant 0 : index
      %c0_9 = arith.constant 0 : index
      %c0_10 = arith.constant 0 : index
      %17 = vector.load %arg5[%c0_8, %c0_9, %c0_10] : memref<1x64x16xbf16, #tpu.memory_space<vmem>>, vector<1x64x16xbf16>
      %18 = vector.shape_cast %17 : vector<1x64x16xbf16> to vector<64x16xbf16>
      %19 = arith.extf %18 : vector<64x16xbf16> to vector<64x16xf32>
      %20 = arith.addf %16, %19 : vector<64x16xf32>
      %cst = arith.constant dense<0.000000e+00> : vector<16xf32>
      %21 = vector.multi_reduction <add>, %20, %cst [0] : vector<64x16xf32> to vector<16xf32>
      %22 = vector.shape_cast %21 : vector<16xf32> to vector<1x16xf32>
      %23 = arith.mulf %20, %20 : vector<64x16xf32>
      %cst_11 = arith.constant dense<0.000000e+00> : vector<16xf32>
      %24 = vector.multi_reduction <add>, %23, %cst_11 [0] : vector<64x16xf32> to vector<16xf32>
      %25 = vector.shape_cast %24 : vector<16xf32> to vector<1x16xf32>
      %26 = tpu.concatenate %22, %25 in 0 : vector<1x16xf32>, vector<1x16xf32> -> vector<2x16xf32>
      %c0_12 = arith.constant 0 : index
      %c0_13 = arith.constant 0 : index
      %c0_14 = arith.constant 0 : index
      %27 = vector.load %arg7[%c0_12, %c0_13, %c0_14] : memref<1x2x16xf32, #tpu.memory_space<vmem>>, vector<1x2x16xf32>
      %28 = vector.shape_cast %27 : vector<1x2x16xf32> to vector<2x16xf32>
      %29 = vector.shape_cast %26 : vector<2x16xf32> to vector<1x2x16xf32>
      tpu.vector_store %arg7[%c0_12, %c0_13, %c0_14], %29 {strides = array<i32>} : memref<1x2x16xf32, #tpu.memory_space<vmem>>, vector<1x2x16xf32>,
      %30 = arith.truncf %20 : vector<64x16xf32> to vector<64x16xbf16>
      %c0_15 = arith.constant 0 : index
      %c0_16 = arith.constant 0 : index
      %c0_17 = arith.constant 0 : index
      %31 = vector.load %arg6[%c0_15, %c0_16, %c0_17] : memref<1x64x16xbf16, #tpu.memory_space<vmem>>, vector<1x64x16xbf16>
      %32 = vector.shape_cast %31 : vector<1x64x16xbf16> to vector<64x16xbf16>
      %33 = vector.shape_cast %30 : vector<64x16xbf16> to vector<1x64x16xbf16>
      tpu.vector_store %arg6[%c0_15, %c0_16, %c0_17], %33 {strides = array<i32>} : memref<1x64x16xbf16, #tpu.memory_space<vmem>>, vector<1x64x16xbf16>,
    } else {
    }
    return
  }
  func.func @transform_0(%arg0: i32, %arg1: i32) -> (i32, i32, i32, i32) {
    %0 = arith.addi %arg0, %arg1 : i32
    %c1_i32 = arith.constant 1 : i32
    %1 = arith.subi %0, %c1_i32 : i32
    %c0_i32 = arith.constant 0 : i32
    %2 = arith.maxsi %1, %c0_i32 : i32
    %c2_i32 = arith.constant 2 : i32
    %3 = arith.minsi %2, %c2_i32 : i32
    %c0_i32_0 = arith.constant 0 : i32
    %c0_i32_1 = arith.constant 0 : i32
    %c0_i32_2 = arith.constant 0 : i32
    %c0_i32_3 = arith.constant 0 : i32
    return %3, %c0_i32_0, %c0_i32_1, %c0_i32_2 : i32, i32, i32, i32
  }
  func.func @transform_1(%arg0: i32, %arg1: i32) -> (i32, i32, i32, i32) {
    %c0_i32 = arith.constant 0 : i32
    %c0_i32_0 = arith.constant 0 : i32
    %c0_i32_1 = arith.constant 0 : i32
    %c0_i32_2 = arith.constant 0 : i32
    %c0_i32_3 = arith.constant 0 : i32
    return %c0_i32, %c0_i32_0, %c0_i32_1, %c0_i32_2 : i32, i32, i32, i32
  }
  func.func @transform_2(%arg0: i32, %arg1: i32) -> (i32, i32) {
    %c0_i32 = arith.constant 0 : i32
    %c0_i32_0 = arith.constant 0 : i32
    %c0_i32_1 = arith.constant 0 : i32
    return %c0_i32, %c0_i32_0 : i32, i32
  }
  func.func @transform_3(%arg0: i32, %arg1: i32) -> (i32, i32, i32) {
    %c0_i32 = arith.constant 0 : i32
    %c0_i32_0 = arith.constant 0 : i32
    %c0_i32_1 = arith.constant 0 : i32
    return %arg0, %c0_i32, %c0_i32_0 : i32, i32, i32
  }
  func.func @transform_4(%arg0: i32, %arg1: i32) -> (i32, i32, i32) {
    %c0_i32 = arith.constant 0 : i32
    %c0_i32_0 = arith.constant 0 : i32
    %c0_i32_1 = arith.constant 0 : i32
    return %arg0, %c0_i32, %c0_i32_0 : i32, i32, i32
  }
  func.func @transform_5(%arg0: i32, %arg1: i32) -> (i32, i32, i32) {
    %c0_i32 = arith.constant 0 : i32
    %c0_i32_0 = arith.constant 0 : i32
    %c0_i32_1 = arith.constant 0 : i32
    return %arg0, %c0_i32, %c0_i32_0 : i32, i32, i32
  }
}

</mosaic_0001>

<llo_original>
// kernel: tpu_custom_call.1
$region0: #{tpu_custom_call.1}
  #allocation0 [shape = 'u32[]', space=smem, size = 0x4, offset = 0x4, fixed_abs, tag = 'smem constant byte address 0x4 - core index']
  #allocation1 [shape = 'u32[72,128]{1,0:T(1,128)}', space=vmem, size = 0x9000, scoped, tag = 'internal scratch']
  #allocation2 [shape = 'bf16[10,10,4]{2,1,0:T(8,128)(2,1)}', space=vmem, size = 0xa000, scoped, tag = 'scratch operand']
  #allocation3 [shape = 'f32[64,16]{1,0:T(8,128)}', space=vmem, size = 0x8000, scoped, tag = 'scratch operand']
  %s0 = inlined_call_operand.vmem [shape: bf16[3,8,8,4], index: 0, kind: input, shape index: {}]
  %s1 = inlined_call_operand.vmem [shape: bf16[9,3,4,16], index: 1, kind: input, shape index: {}]
  %s2 = inlined_call_operand.vmem [shape: f32[1,16], index: 2, kind: input, shape index: {}]
  %s3 = inlined_call_operand.vmem [shape: bf16[3,64,16], index: 3, kind: input, shape index: {}]
  %s4 = inlined_call_operand.vmem [shape: bf16[3,64,16], index: 4, kind: output, shape index: {0}]
  %s5 = inlined_call_operand.hbm [shape: f32[3,2,16], index: 5, kind: output, shape index: {1}]
  %6 = xla_tuple %s4, %s5
  %s7 = sld [smem:[#allocation0]]
  $region69: #{tpu_custom_call.1} parent=0
    _
  %s9 = ssub.s32 1, %s7
  %s10 = scalar_select 0, %s9, %s7
  $region1: #{tpu_custom_call.1} parent=0
    #allocation4 [shape = 'u8[2048]{0}', space=vmem, size = 0x800, scoped, tag = 'output window, operand 1']
    #allocation5 [shape = 's32[2]{0}', space=sflag, size = 0x8, scoped, tag = 'scoped memory for tpu_custom_call.1']
    %11 = vsyncpa [#allocation5], 0
    %s12 = scalar_lea.sflag [#allocation5], 1
    %13 = vsyncpa %s12, 0
    loop: start=0, step=1, limit=11
    $region2: #{tpu_custom_call.1} parent=1 // loop_pre_header
      _
    $region3: #{tpu_custom_call.1} parent=1 // loop_header
      %s15 = sphi 0, %s19
      %p16 = scmp.ge.s32.totalorder %s15, 11
      %s22 = sphi 0, %s34
      %s23 = sphi 0, %s30
      %s24 = sphi 0, %s22
      %s25 = sphi 0, %s23
      %s26 = sphi 0, %s24
      %s27 = sphi 0, %s25
      %s49 = sphi 0, %s51
      %s52 = sphi 0, %s49
      %s53 = sphi 0, %s52
      %s69 = sphi 0, %s53
      %s73 = sphi 0, %s73
      %s75 = sphi 0, %s73
      %s76 = sphi 0, %s75
      %s90 = sphi 0, %s76
      %s94 = sphi 0, %s94
      %s96 = sphi 0, %s94
      %s97 = sphi 0, %s96
      %s111 = sphi 0, %s97
      %s117 = sphi 0, %s119
      %s120 = sphi 0, %s117
      %s121 = sphi 0, %s120
      %s137 = sphi 0, %s121
      %s143 = sphi 0, %s145
      %s146 = sphi 0, %s143
      %s147 = sphi 0, %s146
      %s163 = sphi 0, %s147
      %s169 = sphi 0, %s171
      %s172 = sphi 0, %s169
      %s173 = sphi 0, %s172
      %s189 = sphi 0, %s173
    $region4: #{tpu_custom_call.1} parent=1 // loop_header_branch
      %18 = sbr.rel (%p16) target = $region8
    $region5: #{tpu_custom_call.1} parent=1 // loop_body
      %s20 = ssub.s32 %s15, 1
      %s21 = ssub.s32 %s15, 2
      %s28 = sadd.s32 1, %s23
      %p29 = scmp.ge.s32.totalorder %s28, 3
      %s30 = scalar_select %p29, 0, %s28
      %s31 = sadd.s32 1, %s22
      %s32 = scalar_select %p29, %s31, %s22
      %p33 = scmp.ge.s32.totalorder %s32, 3
      %s34 = scalar_select %p33, 0, %s32
      %s35 = sadd.s32 %s22, %s23
      %s36 = ssub.s32 %s35, 1
      %p37 = scmp.gt.s32.totalorder %s36, 0
      %s38 = scalar_select %p37, %s36, 0
      %p39 = scmp.lt.s32.totalorder %s38, 2
      %s40 = scalar_select %p39, %s38, 2
      %s41 = sadd.s32 %s34, %s30
      %s42 = ssub.s32 %s41, 1
      %p43 = scmp.gt.s32.totalorder %s42, 0
      %s44 = scalar_select %p43, %s42, 0
      %p45 = scmp.lt.s32.totalorder %s44, 2
      %s46 = scalar_select %p45, %s44, 2
      %s47 = ssub.s32 %s40, %s46
      %p48 = scmp.eq.s32.totalorder %s47, 0
      %s50 = sadd.s32 %s49, 1
      %s51 = scalar_select %p48, %s49, %s50
      %p54 = pneg %p48
      %p55 = scmp.eq.s32.totalorder %s15, 8
      %p56 = por %p54, %p55
      %p57 = scmp.ne.s32.totalorder %s49, %s52
      %p58 = scmp.eq.s32.totalorder %s15, 0
      %p59 = por %p57, %p58
      %p60 = scmp.ne.s32.totalorder %s49, %s52
      %p61 = scmp.eq.s32.totalorder %s20, 8
      %p62 = por %p60, %p61
      %p63 = scmp.ne.s32.totalorder %s52, %s53
      %p64 = scmp.eq.s32.totalorder %s20, 0
      %p65 = por %p63, %p64
      %p66 = scmp.ne.s32.totalorder %s52, %s53
      %p67 = scmp.eq.s32.totalorder %s21, 8
      %p68 = por %p66, %p67
      %p70 = scmp.ne.s32.totalorder %s53, %s69
      %p71 = scmp.eq.s32.totalorder %s21, 0
      %p72 = por %p70, %p71
      %s74 = sadd.s32 %s73, 1
      %p77 = scmp.eq.s32.totalorder %s15, 8
      %p78 = scmp.ne.s32.totalorder %s73, %s75
      %p79 = scmp.eq.s32.totalorder %s15, 0
      %p80 = por %p78, %p79
      %p81 = scmp.ne.s32.totalorder %s73, %s75
      %p82 = scmp.eq.s32.totalorder %s20, 8
      %p83 = por %p81, %p82
      %p84 = scmp.ne.s32.totalorder %s75, %s76
      %p85 = scmp.eq.s32.totalorder %s20, 0
      %p86 = por %p84, %p85
      %p87 = scmp.ne.s32.totalorder %s75, %s76
      %p88 = scmp.eq.s32.totalorder %s21, 8
      %p89 = por %p87, %p88
      %p91 = scmp.ne.s32.totalorder %s76, %s90
      %p92 = scmp.eq.s32.totalorder %s21, 0
      %p93 = por %p91, %p92
      %s95 = sadd.s32 %s94, 1
      %p98 = scmp.eq.s32.totalorder %s15, 8
      %p99 = scmp.ne.s32.totalorder %s94, %s96
      %p100 = scmp.eq.s32.totalorder %s15, 0
      %p101 = por %p99, %p100
      %p102 = scmp.ne.s32.totalorder %s94, %s96
      %p103 = scmp.eq.s32.totalorder %s20, 8
      %p104 = por %p102, %p103
      %p105 = scmp.ne.s32.totalorder %s96, %s97
      %p106 = scmp.eq.s32.totalorder %s20, 0
      %p107 = por %p105, %p106
      %p108 = scmp.ne.s32.totalorder %s96, %s97
      %p109 = scmp.eq.s32.totalorder %s21, 8
      %p110 = por %p108, %p109
      %p112 = scmp.ne.s32.totalorder %s97, %s111
      %p113 = scmp.eq.s32.totalorder %s21, 0
      %p114 = por %p112, %p113
      %s115 = ssub.s32 %s22, %s34
      %p116 = scmp.eq.s32.totalorder %s115, 0
      %s118 = sadd.s32 %s117, 1
      %s119 = scalar_select %p116, %s117, %s118
      %p122 = pneg %p116
      %p123 = scmp.eq.s32.totalorder %s15, 8
      %p124 = por %p122, %p123
      %p125 = scmp.ne.s32.totalorder %s117, %s120
      %p126 = scmp.eq.s32.totalorder %s15, 0
      %p127 = por %p125, %p126
      %p128 = scmp.ne.s32.totalorder %s117, %s120
      %p129 = scmp.eq.s32.totalorder %s20, 8
      %p130 = por %p128, %p129
      %p131 = scmp.ne.s32.totalorder %s120, %s121
      %p132 = scmp.eq.s32.totalorder %s20, 0
      %p133 = por %p131, %p132
      %p134 = scmp.ne.s32.totalorder %s120, %s121
      %p135 = scmp.eq.s32.totalorder %s21, 8
      %p136 = por %p134, %p135
      %p138 = scmp.ne.s32.totalorder %s121, %s137
      %p139 = scmp.eq.s32.totalorder %s21, 0
      %p140 = por %p138, %p139
      %s141 = ssub.s32 %s22, %s34
      %p142 = scmp.eq.s32.totalorder %s141, 0
      %s144 = sadd.s32 %s143, 1
      %s145 = scalar_select %p142, %s143, %s144
      %p148 = pneg %p142
      %p149 = scmp.eq.s32.totalorder %s15, 8
      %p150 = por %p148, %p149
      %p151 = scmp.ne.s32.totalorder %s143, %s146
      %p152 = scmp.eq.s32.totalorder %s15, 0
      %p153 = por %p151, %p152
      %p154 = scmp.ne.s32.totalorder %s143, %s146
      %p155 = scmp.eq.s32.totalorder %s20, 8
      %p156 = por %p154, %p155
      %p157 = scmp.ne.s32.totalorder %s146, %s147
      %p158 = scmp.eq.s32.totalorder %s20, 0
      %p159 = por %p157, %p158
      %p160 = scmp.ne.s32.totalorder %s146, %s147
      %p161 = scmp.eq.s32.totalorder %s21, 8
      %p162 = por %p160, %p161
      %p164 = scmp.ne.s32.totalorder %s147, %s163
      %p165 = scmp.eq.s32.totalorder %s21, 0
      %p166 = por %p164, %p165
      %s167 = ssub.s32 %s22, %s34
      %p168 = scmp.eq.s32.totalorder %s167, 0
      %s170 = sadd.s32 %s169, 1
      %s171 = scalar_select %p168, %s169, %s170
      %p174 = pneg %p168
      %p175 = scmp.eq.s32.totalorder %s15, 8
      %p176 = por %p174, %p175
      %p177 = scmp.ne.s32.totalorder %s169, %s172
      %p178 = scmp.eq.s32.totalorder %s15, 0
      %p179 = por %p177, %p178
      %p180 = scmp.ne.s32.totalorder %s169, %s172
      %p181 = scmp.eq.s32.totalorder %s20, 8
      %p182 = por %p180, %p181
      %p183 = scmp.ne.s32.totalorder %s172, %s173
      %p184 = scmp.eq.s32.totalorder %s20, 0
      %p185 = por %p183, %p184
      %p186 = scmp.ne.s32.totalorder %s172, %s173
      %p187 = scmp.eq.s32.totalorder %s21, 8
      %p188 = por %p186, %p187
      %p190 = scmp.ne.s32.totalorder %s173, %s189
      %p191 = scmp.eq.s32.totalorder %s21, 0
      %p192 = por %p190, %p191
      %p193 = scmp.le.s32.totalorder 1, %s15
      %p194 = scmp.lt.s32.totalorder %s15, 10
      %p195 = pnand %p193, %p194
      %p196 = pneg %p195
      // Predicated region
      $region9: #{tpu_custom_call.1} parent=5 // pred_check
        _
      $region10: #{tpu_custom_call.1} parent=5 // pred_check_branch
        %198 = sbr.rel (%p195) target = $region12
      $region11: #{tpu_custom_call.1} parent=5 // pred_region
        %s199 = ssub.s32 %s15, 1
        // Predicated region
        $region13: #{tpu_custom_call.1} parent=11 // pred_check
          %p200 = pneg %p86
        $region14: #{tpu_custom_call.1} parent=11 // pred_check_branch
          %202 = sbr.rel (%p200) target = $region16
        $region15: #{tpu_custom_call.1} parent=11 // pred_region
          _
        $region16: #{tpu_custom_call.1} parent=11 // pred_fallthru
          _
        // Predicated region
        $region17: #{tpu_custom_call.1} parent=11 // pred_check
          %p203 = pneg %p107
        $region18: #{tpu_custom_call.1} parent=11 // pred_check_branch
          %205 = sbr.rel (%p203) target = $region20
        $region19: #{tpu_custom_call.1} parent=11 // pred_region
          _
        $region20: #{tpu_custom_call.1} parent=11 // pred_fallthru
          _
      $region12: #{tpu_custom_call.1} parent=5 // pred_fallthru
        _
      %p206 = scmp.lt.s32.totalorder %s15, 9
      // Predicated region
      $region21: #{tpu_custom_call.1} parent=5 // pred_check
        %p207 = pneg %p206
      $region22: #{tpu_custom_call.1} parent=5 // pred_check_branch
        %209 = sbr.rel (%p207) target = $region24
      $region23: #{tpu_custom_call.1} parent=5 // pred_region
        // Predicated region
        $region25: #{tpu_custom_call.1} parent=23 // pred_check
          %p210 = pneg %p59
        $region26: #{tpu_custom_call.1} parent=23 // pred_check_branch
          %212 = sbr.rel (%p210) target = $region28
        $region27: #{tpu_custom_call.1} parent=23 // pred_region
          %s213 = sadd.s32 %s22, %s23
          %s214 = ssub.s32 %s213, 1
          %p215 = scmp.gt.s32.totalorder %s214, 0
          %s216 = scalar_select %p215, %s214, 0
          %p217 = scmp.lt.s32.totalorder %s216, 2
          %s218 = scalar_select %p217, %s216, 2
          %p219 = scmp.lt.s32.totalorder %s218, 2
          %s220 = scalar_select %p219, %s218, 2
          %s221 = smul.addr %s220, 8
          %s222 = smul.addr %s221, 4
          %s223 = scalar_lea.vmem %s0, %s222
          %s224 = sadd.s32 %s22, %s23
          %s225 = ssub.s32 %s224, 1
          %p226 = scmp.gt.s32.totalorder %s225, 0
          %s227 = scalar_select %p226, %s225, 0
          %p228 = scmp.lt.s32.totalorder %s227, 2
          %s229 = scalar_select %p228, %s227, 2
        $region28: #{tpu_custom_call.1} parent=23 // pred_fallthru
          _
        // Predicated region
        $region29: #{tpu_custom_call.1} parent=23 // pred_check
          %p230 = pneg %p127
        $region30: #{tpu_custom_call.1} parent=23 // pred_check_branch
          %232 = sbr.rel (%p230) target = $region32
        $region31: #{tpu_custom_call.1} parent=23 // pred_region
          %p233 = scmp.lt.s32.totalorder %s22, 2
          %s234 = scalar_select %p233, %s22, 2
          %s235 = smul.addr %s234, 8
          %s236 = smul.addr %s235, 4
          %s237 = scalar_lea.vmem %s3, %s236
        $region32: #{tpu_custom_call.1} parent=23 // pred_fallthru
          _
      $region24: #{tpu_custom_call.1} parent=5 // pred_fallthru
        _
      %p238 = scmp.le.s32.totalorder 1, %s15
      %p239 = scmp.lt.s32.totalorder %s15, 10
      %p240 = pnand %p238, %p239
      %p241 = pneg %p240
      // Predicated region
      $region33: #{tpu_custom_call.1} parent=5 // pred_check
        _
      $region34: #{tpu_custom_call.1} parent=5 // pred_check_branch
        %243 = sbr.rel (%p240) target = $region36
      $region35: #{tpu_custom_call.1} parent=5 // pred_region
        %s244 = ssub.s32 %s15, 1
        %s245 = sadd.s32 %s24, %s25
        %s246 = ssub.s32 %s245, 1
        %p247 = scmp.gt.s32.totalorder %s246, 0
        %s248 = scalar_select %p247, %s246, 0
        %p249 = scmp.lt.s32.totalorder %s248, 2
        %s250 = scalar_select %p249, %s248, 2
        %p251 = scmp.lt.s32.totalorder %s250, 2
        %s252 = scalar_select %p251, %s250, 2
        %s253 = smul.addr %s252, 8
        %s254 = smul.addr %s253, 4
        %s255 = scalar_lea.vmem %s0, %s254
        %p256 = pneg %p65
        %p257 = pneg %p62
        %p258 = pneg %p86
        %p259 = pneg %p83
        %p260 = pneg %p107
        %p261 = pneg %p104
        %p262 = scmp.lt.s32.totalorder %s24, 2
        %s263 = scalar_select %p262, %s24, 2
        %s264 = smul.addr %s263, 8
        %s265 = smul.addr %s264, 4
        %s266 = scalar_lea.vmem %s3, %s265
        %p267 = pneg %p133
        %p268 = pneg %p130
        %p269 = pneg %p159
        %p270 = pneg %p156
        %p271 = scmp.lt.s32.totalorder %s24, 2
        %s272 = scalar_select %p271, %s24, 2
        %s273 = smul.addr %s272, 8
        %s274 = smul.addr %s273, 4
        %s275 = scalar_lea.vmem %s4, %s274
        %p276 = pneg %p185
        %p277 = pneg %p182
        %s278 = sand.u32 %s172, 1
        %s279 = scalar_lea.sflag [#allocation5], %s278
        %s280 = sand.u32 %s172, 1
        %s281 = smul.addr %s280, 2
        %s282 = scalar_lea.vmem [#allocation4], %s281
        %s283 = sadd.s32 %s24, %s25
        %s284 = ssub.s32 %s283, 1
        %p285 = scmp.gt.s32.totalorder %s284, 0
        %s286 = scalar_select %p285, %s284, 0
        %p287 = scmp.lt.s32.totalorder %s286, 2
        %s288 = scalar_select %p287, %s286, 2
        %p289 = scmp.lt.s32.totalorder %s288, 2
        %s290 = scalar_select %p289, %s288, 2
        %s291 = smul.addr %s290, 8
        %s292 = smul.addr %s291, 4
        %s293 = scalar_lea.vmem %s0, %s292
        %s294 = sadd.s32 %s24, %s25
        %s295 = ssub.s32 %s294, 1
        %p296 = scmp.gt.s32.totalorder %s295, 0
        %s297 = scalar_select %p296, %s295, 0
        %p298 = scmp.lt.s32.totalorder %s297, 2
        %s299 = scalar_select %p298, %s297, 2
        %p300 = scmp.lt.s32.totalorder %s24, 2
        %s301 = scalar_select %p300, %s24, 2
        %s302 = smul.addr %s301, 8
        %s303 = smul.addr %s302, 4
        %s304 = scalar_lea.vmem %s3, %s303
        %p305 = scmp.lt.s32.totalorder %s24, 2
        %s306 = scalar_select %p305, %s24, 2
        %s307 = smul.addr %s306, 8
        %s308 = smul.addr %s307, 4
        %s309 = scalar_lea.vmem %s4, %s308
        %s311 = sadd.s32 %s24, %s25
        %s312 = ssub.s32 %s311, 1
        %p313 = scmp.ge.s32.totalorder %s312, 0
        %p314 = scmp.le.s32.totalorder %s312, 2
        %p315 = pnand %p313, %p314
        %p316 = pneg %p315
        %p317 = scmp.eq.s32.totalorder %s25, 0
        // Predicated region
        $region37: #{tpu_custom_call.1} parent=35 // pred_check
          %p318 = pneg %p317
        $region38: #{tpu_custom_call.1} parent=35 // pred_check_branch
          %320 = sbr.rel (%p318) target = $region40
        $region39: #{tpu_custom_call.1} parent=35 // pred_region
          %vm321 = vcmask 27648
          %322 = vst.msk [vmem:[#allocation2] sm:$0xf] %vm321, 0
          %vm323 = vcmask 24576
          %324 = vst.msk [vmem:[#allocation2 + $0x4] sm:$0x1] %vm323, 0
          %325 = vst.msk [vmem:[#allocation2 + $0x8] sm:$0xf] %vm321, 0
          %326 = vst.msk [vmem:[#allocation2 + $0xc] sm:$0x1] %vm323, 0
          %327 = vst.msk [vmem:[#allocation2 + $0x10] sm:$0xf] %vm321, 0
          %328 = vst.msk [vmem:[#allocation2 + $0x14] sm:$0x1] %vm323, 0
          %329 = vst.msk [vmem:[#allocation2 + $0x18] sm:$0xf] %vm321, 0
          %330 = vst.msk [vmem:[#allocation2 + $0x1c] sm:$0x1] %vm323, 0
          %331 = vst.msk [vmem:[#allocation2 + $0x20] sm:$0xf] %vm321, 0
          %332 = vst.msk [vmem:[#allocation2 + $0x24] sm:$0x1] %vm323, 0
          %333 = vst.msk [vmem:[#allocation2 + $0x28] sm:$0xf] %vm321, 0
          %334 = vst.msk [vmem:[#allocation2 + $0x2c] sm:$0x1] %vm323, 0
          %335 = vst.msk [vmem:[#allocation2 + $0x30] sm:$0xf] %vm321, 0
          %336 = vst.msk [vmem:[#allocation2 + $0x34] sm:$0x1] %vm323, 0
          %337 = vst.msk [vmem:[#allocation2 + $0x38] sm:$0xf] %vm321, 0
          %338 = vst.msk [vmem:[#allocation2 + $0x3c] sm:$0x1] %vm323, 0
          %339 = vst.msk [vmem:[#allocation2 + $0x40] sm:$0xf] %vm321, 0
          %340 = vst.msk [vmem:[#allocation2 + $0x44] sm:$0x1] %vm323, 0
          %341 = vst.msk [vmem:[#allocation2 + $0x48] sm:$0xf] %vm321, 0
          %342 = vst.msk [vmem:[#allocation2 + $0x4c] sm:$0x1] %vm323, 0
          %vm343 = vcmask 130048
          %344 = vst.msk [vmem:[#allocation3] sm:$0xff] %vm343, 0.0
          %345 = vst.msk [vmem:[#allocation3 + $0x8] sm:$0xff] %vm343, 0.0
          %346 = vst.msk [vmem:[#allocation3 + $0x10] sm:$0xff] %vm343, 0.0
          %347 = vst.msk [vmem:[#allocation3 + $0x18] sm:$0xff] %vm343, 0.0
          %348 = vst.msk [vmem:[#allocation3 + $0x20] sm:$0xff] %vm343, 0.0
          %349 = vst.msk [vmem:[#allocation3 + $0x28] sm:$0xff] %vm343, 0.0
          %350 = vst.msk [vmem:[#allocation3 + $0x30] sm:$0xff] %vm343, 0.0
          %351 = vst.msk [vmem:[#allocation3 + $0x38] sm:$0xff] %vm343, 0.0
        $region40: #{tpu_custom_call.1} parent=35 // pred_fallthru
          _
        // Predicated region
        $region41: #{tpu_custom_call.1} parent=35 // pred_check
          _
        $region42: #{tpu_custom_call.1} parent=35 // pred_check_branch
          %353 = sbr.rel (%p315) target = $region44
        $region43: #{tpu_custom_call.1} parent=35 // pred_region
          %v354 = vld [vmem:[%s293] sm:$0xf]
          %v355 = vld [vmem:[%s293 + $0x4] sm:$0xf]
          %v356 = vld [vmem:[%s293 + $0x8] sm:$0xf]
          %v357 = vld [vmem:[%s293 + $0xc] sm:$0xf]
          %v358 = vld [vmem:[%s293 + $0x10] sm:$0xf]
          %v359 = vld [vmem:[%s293 + $0x14] sm:$0xf]
          %v360 = vld [vmem:[%s293 + $0x18] sm:$0xf]
          %v361 = vld [vmem:[%s293 + $0x1c] sm:$0xf]
          %v363 = vshrl.u32 %v354, 16
          %v365 = vrot.slane %v363, 7
          %v366 = vshll.u32 %v354, 16
          %v368 = vor.u32 %v365, %v366
          %v369 = vrot.slane %v365, 4
          %v371 = vshrl.u32 %v355, 16
          %v373 = vrot.slane %v371, 7
          %v374 = vshll.u32 %v355, 16
          %v376 = vor.u32 %v373, %v374
          %v377 = vrot.slane %v373, 4
          %v379 = vshrl.u32 %v356, 16
          %v381 = vrot.slane %v379, 7
          %v382 = vshll.u32 %v356, 16
          %v384 = vor.u32 %v381, %v382
          %v385 = vrot.slane %v381, 4
          %v387 = vshrl.u32 %v357, 16
          %v389 = vrot.slane %v387, 7
          %v390 = vshll.u32 %v357, 16
          %v392 = vor.u32 %v389, %v390
          %v393 = vrot.slane %v389, 4
          %v395 = vshrl.u32 %v358, 16
          %v397 = vrot.slane %v395, 7
          %v398 = vshll.u32 %v358, 16
          %v400 = vor.u32 %v397, %v398
          %v401 = vrot.slane %v397, 4
          %v403 = vshrl.u32 %v359, 16
          %v405 = vrot.slane %v403, 7
          %v406 = vshll.u32 %v359, 16
          %v408 = vor.u32 %v405, %v406
          %v409 = vrot.slane %v405, 4
          %v411 = vshrl.u32 %v360, 16
          %v413 = vrot.slane %v411, 7
          %v414 = vshll.u32 %v360, 16
          %v416 = vor.u32 %v413, %v414
          %v417 = vrot.slane %v413, 4
          %v419 = vshrl.u32 %v361, 16
          %v421 = vrot.slane %v419, 7
          %v422 = vshll.u32 %v361, 16
          %v424 = vor.u32 %v421, %v422
          %v425 = vrot.slane %v421, 4
          %s442 = scalar_lea.vmem [#allocation2], 8
          %vm443 = vcmask 27648
          %vm444 = vsmask.f32 7938
          %vm445 = vmand %vm443, %vm444
          %v446 = vld [vmem:[%s442] sm:$0xf]
          %v447 = vsel %vm445, %v368, %v446
          %448 = vst [vmem:[%s442] sm:$0xf] %v447
          %vm449 = vcmask 24576
          %vm450 = vsmask.f32 256
          %vm451 = vmand %vm449, %vm450
          %v452 = vld [vmem:[%s442 + $0x4] sm:$0x1]
          %v453 = vsel %vm451, %v369, %v452
          %454 = vst [vmem:[%s442 + $0x4] sm:$0x1] %v453
          %v455 = vld [vmem:[%s442 + $0x8] sm:$0xf]
          %v456 = vsel %vm445, %v376, %v455
          %457 = vst [vmem:[%s442 + $0x8] sm:$0xf] %v456
          %v458 = vld [vmem:[%s442 + $0xc] sm:$0x1]
          %v459 = vsel %vm451, %v377, %v458
          %460 = vst [vmem:[%s442 + $0xc] sm:$0x1] %v459
          %v461 = vld [vmem:[%s442 + $0x10] sm:$0xf]
          %v462 = vsel %vm445, %v384, %v461
          %463 = vst [vmem:[%s442 + $0x10] sm:$0xf] %v462
          %v464 = vld [vmem:[%s442 + $0x14] sm:$0x1]
          %v465 = vsel %vm451, %v385, %v464
          %466 = vst [vmem:[%s442 + $0x14] sm:$0x1] %v465
          %v467 = vld [vmem:[%s442 + $0x18] sm:$0xf]
          %v468 = vsel %vm445, %v392, %v467
          %469 = vst [vmem:[%s442 + $0x18] sm:$0xf] %v468
          %v470 = vld [vmem:[%s442 + $0x1c] sm:$0x1]
          %v471 = vsel %vm451, %v393, %v470
          %472 = vst [vmem:[%s442 + $0x1c] sm:$0x1] %v471
          %v473 = vld [vmem:[%s442 + $0x20] sm:$0xf]
          %v474 = vsel %vm445, %v400, %v473
          %475 = vst [vmem:[%s442 + $0x20] sm:$0xf] %v474
          %v476 = vld [vmem:[%s442 + $0x24] sm:$0x1]
          %v477 = vsel %vm451, %v401, %v476
          %478 = vst [vmem:[%s442 + $0x24] sm:$0x1] %v477
          %v479 = vld [vmem:[%s442 + $0x28] sm:$0xf]
          %v480 = vsel %vm445, %v408, %v479
          %481 = vst [vmem:[%s442 + $0x28] sm:$0xf] %v480
          %v482 = vld [vmem:[%s442 + $0x2c] sm:$0x1]
          %v483 = vsel %vm451, %v409, %v482
          %484 = vst [vmem:[%s442 + $0x2c] sm:$0x1] %v483
          %v485 = vld [vmem:[%s442 + $0x30] sm:$0xf]
          %v486 = vsel %vm445, %v416, %v485
          %487 = vst [vmem:[%s442 + $0x30] sm:$0xf] %v486
          %v488 = vld [vmem:[%s442 + $0x34] sm:$0x1]
          %v489 = vsel %vm451, %v417, %v488
          %490 = vst [vmem:[%s442 + $0x34] sm:$0x1] %v489
          %v491 = vld [vmem:[%s442 + $0x38] sm:$0xf]
          %v492 = vsel %vm445, %v424, %v491
          %493 = vst [vmem:[%s442 + $0x38] sm:$0xf] %v492
          %v494 = vld [vmem:[%s442 + $0x3c] sm:$0x1]
          %v495 = vsel %vm451, %v425, %v494
          %496 = vst [vmem:[%s442 + $0x3c] sm:$0x1] %v495
          %v497 = vld [vmem:[#allocation2] sm:$0xf]
          %v498 = vld [vmem:[#allocation2 + $0x8] sm:$0xf]
          %v499 = vld [vmem:[#allocation2 + $0x10] sm:$0xf]
          %v500 = vld [vmem:[#allocation2 + $0x18] sm:$0xf]
          %v501 = vld [vmem:[#allocation2 + $0x20] sm:$0xf]
          %v502 = vld [vmem:[#allocation2 + $0x28] sm:$0xf]
          %v503 = vld [vmem:[#allocation2 + $0x30] sm:$0xf]
          %v504 = vld [vmem:[#allocation2 + $0x38] sm:$0xf]
          %v505 = vld [vmem:[#allocation3] sm:$0xff]
          %v506 = vld [vmem:[#allocation3 + $0x8] sm:$0xff]
          %v507 = vld [vmem:[#allocation3 + $0x10] sm:$0xff]
          %v508 = vld [vmem:[#allocation3 + $0x18] sm:$0xff]
          %v509 = vld [vmem:[#allocation3 + $0x20] sm:$0xff]
          %v510 = vld [vmem:[#allocation3 + $0x28] sm:$0xff]
          %v511 = vld [vmem:[#allocation3 + $0x30] sm:$0xff]
          %v512 = vld [vmem:[#allocation3 + $0x38] sm:$0xff]
          %s513 = smul.u32 %s25, 3
          %s514 = smul.u32 %s513, 3
          %s515 = smul.addr %s514, 2
          %s516 = scalar_lea.vmem %s1, %s515
          %v517 = vld [vmem:[%s516] sm:$0x3]
          %v526 = vunpack.c.l.b16 %v497
          %v527 = vunpack.c.l.b16 %v498
          %v528 = vunpack.c.l.b16 %v499
          %v529 = vunpack.c.l.b16 %v500
          %v530 = vunpack.c.l.b16 %v501
          %v531 = vunpack.c.l.b16 %v502
          %v532 = vunpack.c.l.b16 %v503
          %v533 = vunpack.c.l.b16 %v504
          %v534 = vpack.c.b16 %v527, %v526
          %v535 = vpack.c.b16 %v529, %v528
          %v536 = vpack.c.b16 %v531, %v530
          %v537 = vpack.c.b16 %v533, %v532
          %vm538 = vcmask 31744
          %v540 = vsel %vm538, %v534, 0
          %v543 = vsel %vm538, %v535, 0
          %v546 = vsel %vm538, %v536, 0
          %v549 = vsel %vm538, %v537, 0
          %vm551 = vcmask 1041408
          %v553 = vsel %vm551, %v517, 0
          %555 = vmatpush.bf16.msra.mxu0 0
          %556 = vmatpush.bf16.msra.mxu0 0
          %557 = vmatpush.bf16.msra.mxu0 0
          %558 = vmatpush.bf16.msra.mxu0 0
          %559 = vmatpush.bf16.msra.mxu0 0
          %560 = vmatpush.bf16.msra.mxu0 0
          %561 = vmatpush.bf16.msra.mxu0 0
          %562 = vmatpush.bf16.msra.mxu0 %v553
          %563 = vmatmul.bf16.gmra.mxu0 %v540
          %v564 = vpop.f32.mrf.mxu0
          %v565 = vadd.f32 0.0, %v564
          %v566 = vpop.f32.mrf.mxu0
          %v567 = vadd.f32 0.0, %v566
          %568 = vmatmul.bf16.gmra.mxu0 %v543
          %v569 = vpop.f32.mrf.mxu0
          %v570 = vadd.f32 0.0, %v569
          %v571 = vpop.f32.mrf.mxu0
          %v572 = vadd.f32 0.0, %v571
          %573 = vmatmul.bf16.gmra.mxu0 %v546
          %v574 = vpop.f32.mrf.mxu0
          %v575 = vadd.f32 0.0, %v574
          %v576 = vpop.f32.mrf.mxu0
          %v577 = vadd.f32 0.0, %v576
          %578 = vmatmul.bf16.gmra.mxu0 %v549
          %v579 = vpop.f32.mrf.mxu0
          %v580 = vadd.f32 0.0, %v579
          %v581 = vpop.f32.mrf.mxu0
          %v582 = vadd.f32 0.0, %v581
          %583 = vdwg.mxu0
          %v584 = vadd.f32 %v505, %v565
          %v585 = vadd.f32 %v506, %v567
          %v586 = vadd.f32 %v507, %v570
          %v587 = vadd.f32 %v508, %v572
          %v588 = vadd.f32 %v509, %v575
          %v589 = vadd.f32 %v510, %v577
          %v590 = vadd.f32 %v511, %v580
          %v591 = vadd.f32 %v512, %v582
          %vm592 = vcmask 130048
          %593 = vst.msk [vmem:[#allocation3] sm:$0xff] %vm592, %v584
          %594 = vst.msk [vmem:[#allocation3 + $0x8] sm:$0xff] %vm592, %v585
          %595 = vst.msk [vmem:[#allocation3 + $0x10] sm:$0xff] %vm592, %v586
          %596 = vst.msk [vmem:[#allocation3 + $0x18] sm:$0xff] %vm592, %v587
          %597 = vst.msk [vmem:[#allocation3 + $0x20] sm:$0xff] %vm592, %v588
          %598 = vst.msk [vmem:[#allocation3 + $0x28] sm:$0xff] %vm592, %v589
          %599 = vst.msk [vmem:[#allocation3 + $0x30] sm:$0xff] %vm592, %v590
          %600 = vst.msk [vmem:[#allocation3 + $0x38] sm:$0xff] %vm592, %v591
          %v601 = vld [vmem:[#allocation2] sm:$0xf]
          %v602 = vld [vmem:[#allocation2 + $0x4] sm:$0x1]
          %v603 = vld [vmem:[#allocation2 + $0x8] sm:$0xf]
          %v604 = vld [vmem:[#allocation2 + $0xc] sm:$0x1]
          %v605 = vld [vmem:[#allocation2 + $0x10] sm:$0xf]
          %v606 = vld [vmem:[#allocation2 + $0x14] sm:$0x1]
          %v607 = vld [vmem:[#allocation2 + $0x18] sm:$0xf]
          %v608 = vld [vmem:[#allocation2 + $0x1c] sm:$0x1]
          %v609 = vld [vmem:[#allocation2 + $0x20] sm:$0xf]
          %v610 = vld [vmem:[#allocation2 + $0x24] sm:$0x1]
          %v611 = vld [vmem:[#allocation2 + $0x28] sm:$0xf]
          %v612 = vld [vmem:[#allocation2 + $0x2c] sm:$0x1]
          %v613 = vld [vmem:[#allocation2 + $0x30] sm:$0xf]
          %v614 = vld [vmem:[#allocation2 + $0x34] sm:$0x1]
          %v615 = vld [vmem:[#allocation2 + $0x38] sm:$0xf]
          %v616 = vld [vmem:[#allocation2 + $0x3c] sm:$0x1]
          %v617 = vld [vmem:[#allocation3] sm:$0xff]
          %v618 = vld [vmem:[#allocation3 + $0x8] sm:$0xff]
          %v619 = vld [vmem:[#allocation3 + $0x10] sm:$0xff]
          %v620 = vld [vmem:[#allocation3 + $0x18] sm:$0xff]
          %v621 = vld [vmem:[#allocation3 + $0x20] sm:$0xff]
          %v622 = vld [vmem:[#allocation3 + $0x28] sm:$0xff]
          %v623 = vld [vmem:[#allocation3 + $0x30] sm:$0xff]
          %v624 = vld [vmem:[#allocation3 + $0x38] sm:$0xff]
          %vm625 = vsmask.f32 3328
          %vm626 = vsmask.f32 7440
          %vm627 = vmor %vm625, %vm626
          %v629 = vshrl.u32 %v601, 16
          %v631 = vrot.slane %v629, 4
          %v632 = vshll.u32 %v601, 16
          %v634 = vrot.slane %v632, 5
          %v635 = vor.u32 %v631, %v634
          %v636 = vrot.slane %v635, 4
          %v638 = vshll.u32 %v602, 16
          %v640 = vrot.slane %v638, 5
          %v641 = vsel %vm627, %v636, %v640
          %v643 = vshrl.u32 %v603, 16
          %v645 = vrot.slane %v643, 4
          %v646 = vshll.u32 %v603, 16
          %v648 = vrot.slane %v646, 5
          %v649 = vor.u32 %v645, %v648
          %v650 = vrot.slane %v649, 4
          %v652 = vshll.u32 %v604, 16
          %v654 = vrot.slane %v652, 5
          %v655 = vsel %vm627, %v650, %v654
          %v657 = vshrl.u32 %v605, 16
          %v659 = vrot.slane %v657, 4
          %v660 = vshll.u32 %v605, 16
          %v662 = vrot.slane %v660, 5
          %v663 = vor.u32 %v659, %v662
          %v664 = vrot.slane %v663, 4
          %v666 = vshll.u32 %v606, 16
          %v668 = vrot.slane %v666, 5
          %v669 = vsel %vm627, %v664, %v668
          %v671 = vshrl.u32 %v607, 16
          %v673 = vrot.slane %v671, 4
          %v674 = vshll.u32 %v607, 16
          %v676 = vrot.slane %v674, 5
          %v677 = vor.u32 %v673, %v676
          %v678 = vrot.slane %v677, 4
          %v680 = vshll.u32 %v608, 16
          %v682 = vrot.slane %v680, 5
          %v683 = vsel %vm627, %v678, %v682
          %v685 = vshrl.u32 %v609, 16
          %v687 = vrot.slane %v685, 4
          %v688 = vshll.u32 %v609, 16
          %v690 = vrot.slane %v688, 5
          %v691 = vor.u32 %v687, %v690
          %v692 = vrot.slane %v691, 4
          %v694 = vshll.u32 %v610, 16
          %v696 = vrot.slane %v694, 5
          %v697 = vsel %vm627, %v692, %v696
          %v699 = vshrl.u32 %v611, 16
          %v701 = vrot.slane %v699, 4
          %v702 = vshll.u32 %v611, 16
          %v704 = vrot.slane %v702, 5
          %v705 = vor.u32 %v701, %v704
          %v706 = vrot.slane %v705, 4
          %v708 = vshll.u32 %v612, 16
          %v710 = vrot.slane %v708, 5
          %v711 = vsel %vm627, %v706, %v710
          %v713 = vshrl.u32 %v613, 16
          %v715 = vrot.slane %v713, 4
          %v716 = vshll.u32 %v613, 16
          %v718 = vrot.slane %v716, 5
          %v719 = vor.u32 %v715, %v718
          %v720 = vrot.slane %v719, 4
          %v722 = vshll.u32 %v614, 16
          %v724 = vrot.slane %v722, 5
          %v725 = vsel %vm627, %v720, %v724
          %v727 = vshrl.u32 %v615, 16
          %v729 = vrot.slane %v727, 4
          %v730 = vshll.u32 %v615, 16
          %v732 = vrot.slane %v730, 5
          %v733 = vor.u32 %v729, %v732
          %v734 = vrot.slane %v733, 4
          %v736 = vshll.u32 %v616, 16
          %v738 = vrot.slane %v736, 5
          %v739 = vsel %vm627, %v734, %v738
          %s740 = sadd.s32 1, %s514
          %s741 = smul.addr %s740, 2
          %s742 = scalar_lea.vmem %s1, %s741
          %v743 = vld [vmem:[%s742] sm:$0x3]
          %v744 = vunpack.c.l.b16 %v641
          %v745 = vunpack.c.l.b16 %v655
          %v746 = vunpack.c.l.b16 %v669
          %v747 = vunpack.c.l.b16 %v683
          %v748 = vunpack.c.l.b16 %v697
          %v749 = vunpack.c.l.b16 %v711
          %v750 = vunpack.c.l.b16 %v725
          %v751 = vunpack.c.l.b16 %v739
          %v752 = vpack.c.b16 %v745, %v744
          %v753 = vpack.c.b16 %v747, %v746
          %v754 = vpack.c.b16 %v749, %v748
          %v755 = vpack.c.b16 %v751, %v750
          %v757 = vsel %vm538, %v752, 0
          %v760 = vsel %vm538, %v753, 0
          %v763 = vsel %vm538, %v754, 0
          %v766 = vsel %vm538, %v755, 0
          %v769 = vsel %vm551, %v743, 0
          %771 = vmatpush.bf16.msra.mxu0 0
          %772 = vmatpush.bf16.msra.mxu0 0
          %773 = vmatpush.bf16.msra.mxu0 0
          %774 = vmatpush.bf16.msra.mxu0 0
          %775 = vmatpush.bf16.msra.mxu0 0
          %776 = vmatpush.bf16.msra.mxu0 0
          %777 = vmatpush.bf16.msra.mxu0 0
          %778 = vmatpush.bf16.msra.mxu0 %v769
          %779 = vmatmul.bf16.gmra.mxu0 %v757
          %v780 = vpop.f32.mrf.mxu0
          %v781 = vadd.f32 0.0, %v780
          %v782 = vpop.f32.mrf.mxu0
          %v783 = vadd.f32 0.0, %v782
          %784 = vmatmul.bf16.gmra.mxu0 %v760
          %v785 = vpop.f32.mrf.mxu0
          %v786 = vadd.f32 0.0, %v785
          %v787 = vpop.f32.mrf.mxu0
          %v788 = vadd.f32 0.0, %v787
          %789 = vmatmul.bf16.gmra.mxu0 %v763
          %v790 = vpop.f32.mrf.mxu0
          %v791 = vadd.f32 0.0, %v790
          %v792 = vpop.f32.mrf.mxu0
          %v793 = vadd.f32 0.0, %v792
          %794 = vmatmul.bf16.gmra.mxu0 %v766
          %v795 = vpop.f32.mrf.mxu0
          %v796 = vadd.f32 0.0, %v795
          %v797 = vpop.f32.mrf.mxu0
          %v798 = vadd.f32 0.0, %v797
          %799 = vdwg.mxu0
          %v800 = vadd.f32 %v617, %v781
          %v801 = vadd.f32 %v618, %v783
          %v802 = vadd.f32 %v619, %v786
          %v803 = vadd.f32 %v620, %v788
          %v804 = vadd.f32 %v621, %v791
          %v805 = vadd.f32 %v622, %v793
          %v806 = vadd.f32 %v623, %v796
          %v807 = vadd.f32 %v624, %v798
          %808 = vst.msk [vmem:[#allocation3] sm:$0xff] %vm592, %v800
          %809 = vst.msk [vmem:[#allocation3 + $0x8] sm:$0xff] %vm592, %v801
          %810 = vst.msk [vmem:[#allocation3 + $0x10] sm:$0xff] %vm592, %v802
          %811 = vst.msk [vmem:[#allocation3 + $0x18] sm:$0xff] %vm592, %v803
          %812 = vst.msk [vmem:[#allocation3 + $0x20] sm:$0xff] %vm592, %v804
          %813 = vst.msk [vmem:[#allocation3 + $0x28] sm:$0xff] %vm592, %v805
          %814 = vst.msk [vmem:[#allocation3 + $0x30] sm:$0xff] %vm592, %v806
          %815 = vst.msk [vmem:[#allocation3 + $0x38] sm:$0xff] %vm592, %v807
          %v816 = vld [vmem:[#allocation2] sm:$0xe]
          %v817 = vld [vmem:[#allocation2 + $0x4] sm:$0x1]
          %v818 = vld [vmem:[#allocation2 + $0x8] sm:$0xe]
          %v819 = vld [vmem:[#allocation2 + $0xc] sm:$0x1]
          %v820 = vld [vmem:[#allocation2 + $0x10] sm:$0xe]
          %v821 = vld [vmem:[#allocation2 + $0x14] sm:$0x1]
          %v822 = vld [vmem:[#allocation2 + $0x18] sm:$0xe]
          %v823 = vld [vmem:[#allocation2 + $0x1c] sm:$0x1]
          %v824 = vld [vmem:[#allocation2 + $0x20] sm:$0xe]
          %v825 = vld [vmem:[#allocation2 + $0x24] sm:$0x1]
          %v826 = vld [vmem:[#allocation2 + $0x28] sm:$0xe]
          %v827 = vld [vmem:[#allocation2 + $0x2c] sm:$0x1]
          %v828 = vld [vmem:[#allocation2 + $0x30] sm:$0xe]
          %v829 = vld [vmem:[#allocation2 + $0x34] sm:$0x1]
          %v830 = vld [vmem:[#allocation2 + $0x38] sm:$0xe]
          %v831 = vld [vmem:[#allocation2 + $0x3c] sm:$0x1]
          %v832 = vld [vmem:[#allocation3] sm:$0xff]
          %v833 = vld [vmem:[#allocation3 + $0x8] sm:$0xff]
          %v834 = vld [vmem:[#allocation3 + $0x10] sm:$0xff]
          %v835 = vld [vmem:[#allocation3 + $0x18] sm:$0xff]
          %v836 = vld [vmem:[#allocation3 + $0x20] sm:$0xff]
          %v837 = vld [vmem:[#allocation3 + $0x28] sm:$0xff]
          %v838 = vld [vmem:[#allocation3 + $0x30] sm:$0xff]
          %v839 = vld [vmem:[#allocation3 + $0x38] sm:$0xff]
          %vm856 = vcmask 1042432
          %vm857 = vcmask 1046532
          %vm858 = vmor %vm856, %vm857
          %v859 = vrot.slane %v816, 5
          %v860 = vrot.slane %v859, 4
          %v861 = vrot.slane %v817, 5
          %v862 = vsel %vm858, %v860, %v861
          %v863 = vrot.slane %v818, 5
          %v864 = vrot.slane %v863, 4
          %v865 = vrot.slane %v819, 5
          %v866 = vsel %vm858, %v864, %v865
          %v867 = vrot.slane %v820, 5
          %v868 = vrot.slane %v867, 4
          %v869 = vrot.slane %v821, 5
          %v870 = vsel %vm858, %v868, %v869
          %v871 = vrot.slane %v822, 5
          %v872 = vrot.slane %v871, 4
          %v873 = vrot.slane %v823, 5
          %v874 = vsel %vm858, %v872, %v873
          %v875 = vrot.slane %v824, 5
          %v876 = vrot.slane %v875, 4
          %v877 = vrot.slane %v825, 5
          %v878 = vsel %vm858, %v876, %v877
          %v879 = vrot.slane %v826, 5
          %v880 = vrot.slane %v879, 4
          %v881 = vrot.slane %v827, 5
          %v882 = vsel %vm858, %v880, %v881
          %v883 = vrot.slane %v828, 5
          %v884 = vrot.slane %v883, 4
          %v885 = vrot.slane %v829, 5
          %v886 = vsel %vm858, %v884, %v885
          %v887 = vrot.slane %v830, 5
          %v888 = vrot.slane %v887, 4
          %v889 = vrot.slane %v831, 5
          %v890 = vsel %vm858, %v888, %v889
          %s891 = sadd.s32 2, %s514
          %s892 = smul.addr %s891, 2
          %s893 = scalar_lea.vmem %s1, %s892
          %v894 = vld [vmem:[%s893] sm:$0x3]
          %v895 = vunpack.c.l.b16 %v862
          %v896 = vunpack.c.l.b16 %v866
          %v897 = vunpack.c.l.b16 %v870
          %v898 = vunpack.c.l.b16 %v874
          %v899 = vunpack.c.l.b16 %v878
          %v900 = vunpack.c.l.b16 %v882
          %v901 = vunpack.c.l.b16 %v886
          %v902 = vunpack.c.l.b16 %v890
          %v903 = vpack.c.b16 %v896, %v895
          %v904 = vpack.c.b16 %v898, %v897
          %v905 = vpack.c.b16 %v900, %v899
          %v906 = vpack.c.b16 %v902, %v901
          %v908 = vsel %vm538, %v903, 0
          %v911 = vsel %vm538, %v904, 0
          %v914 = vsel %vm538, %v905, 0
          %v917 = vsel %vm538, %v906, 0
          %v920 = vsel %vm551, %v894, 0
          %922 = vmatpush.bf16.msra.mxu0 0
          %923 = vmatpush.bf16.msra.mxu0 0
          %924 = vmatpush.bf16.msra.mxu0 0
          %925 = vmatpush.bf16.msra.mxu0 0
          %926 = vmatpush.bf16.msra.mxu0 0
          %927 = vmatpush.bf16.msra.mxu0 0
          %928 = vmatpush.bf16.msra.mxu0 0
          %929 = vmatpush.bf16.msra.mxu0 %v920
          %930 = vmatmul.bf16.gmra.mxu0 %v908
          %v931 = vpop.f32.mrf.mxu0
          %v932 = vadd.f32 0.0, %v931
          %v933 = vpop.f32.mrf.mxu0
          %v934 = vadd.f32 0.0, %v933
          %935 = vmatmul.bf16.gmra.mxu0 %v911
          %v936 = vpop.f32.mrf.mxu0
          %v937 = vadd.f32 0.0, %v936
          %v938 = vpop.f32.mrf.mxu0
          %v939 = vadd.f32 0.0, %v938
          %940 = vmatmul.bf16.gmra.mxu0 %v914
          %v941 = vpop.f32.mrf.mxu0
          %v942 = vadd.f32 0.0, %v941
          %v943 = vpop.f32.mrf.mxu0
          %v944 = vadd.f32 0.0, %v943
          %945 = vmatmul.bf16.gmra.mxu0 %v917
          %v946 = vpop.f32.mrf.mxu0
          %v947 = vadd.f32 0.0, %v946
          %v948 = vpop.f32.mrf.mxu0
          %v949 = vadd.f32 0.0, %v948
          %950 = vdwg.mxu0
          %v951 = vadd.f32 %v832, %v932
          %v952 = vadd.f32 %v833, %v934
          %v953 = vadd.f32 %v834, %v937
          %v954 = vadd.f32 %v835, %v939
          %v955 = vadd.f32 %v836, %v942
          %v956 = vadd.f32 %v837, %v944
          %v957 = vadd.f32 %v838, %v947
          %v958 = vadd.f32 %v839, %v949
          %959 = vst.msk [vmem:[#allocation3] sm:$0xff] %vm592, %v951
          %960 = vst.msk [vmem:[#allocation3 + $0x8] sm:$0xff] %vm592, %v952
          %961 = vst.msk [vmem:[#allocation3 + $0x10] sm:$0xff] %vm592, %v953
          %962 = vst.msk [vmem:[#allocation3 + $0x18] sm:$0xff] %vm592, %v954
          %963 = vst.msk [vmem:[#allocation3 + $0x20] sm:$0xff] %vm592, %v955
          %964 = vst.msk [vmem:[#allocation3 + $0x28] sm:$0xff] %vm592, %v956
          %965 = vst.msk [vmem:[#allocation3 + $0x30] sm:$0xff] %vm592, %v957
          %966 = vst.msk [vmem:[#allocation3 + $0x38] sm:$0xff] %vm592, %v958
          %v967 = vld [vmem:[%s442] sm:$0xf]
          %v968 = vld [vmem:[%s442 + $0x8] sm:$0xf]
          %v969 = vld [vmem:[%s442 + $0x10] sm:$0xf]
          %v970 = vld [vmem:[%s442 + $0x18] sm:$0xf]
          %v971 = vld [vmem:[%s442 + $0x20] sm:$0xf]
          %v972 = vld [vmem:[%s442 + $0x28] sm:$0xf]
          %v973 = vld [vmem:[%s442 + $0x30] sm:$0xf]
          %v974 = vld [vmem:[%s442 + $0x38] sm:$0xf]
          %v975 = vld [vmem:[#allocation3] sm:$0xff]
          %v976 = vld [vmem:[#allocation3 + $0x8] sm:$0xff]
          %v977 = vld [vmem:[#allocation3 + $0x10] sm:$0xff]
          %v978 = vld [vmem:[#allocation3 + $0x18] sm:$0xff]
          %v979 = vld [vmem:[#allocation3 + $0x20] sm:$0xff]
          %v980 = vld [vmem:[#allocation3 + $0x28] sm:$0xff]
          %v981 = vld [vmem:[#allocation3 + $0x30] sm:$0xff]
          %v982 = vld [vmem:[#allocation3 + $0x38] sm:$0xff]
          %s983 = sadd.s32 %s513, 1
          %s984 = smul.u32 %s983, 3
          %s985 = smul.addr %s984, 2
          %s986 = scalar_lea.vmem %s1, %s985
          %v987 = vld [vmem:[%s986] sm:$0x3]
          %v996 = vunpack.c.l.b16 %v967
          %v997 = vunpack.c.l.b16 %v968
          %v998 = vunpack.c.l.b16 %v969
          %v999 = vunpack.c.l.b16 %v970
          %v1000 = vunpack.c.l.b16 %v971
          %v1001 = vunpack.c.l.b16 %v972
          %v1002 = vunpack.c.l.b16 %v973
          %v1003 = vunpack.c.l.b16 %v974
          %v1004 = vpack.c.b16 %v997, %v996
          %v1005 = vpack.c.b16 %v999, %v998
          %v1006 = vpack.c.b16 %v1001, %v1000
          %v1007 = vpack.c.b16 %v1003, %v1002
          %v1009 = vsel %vm538, %v1004, 0
          %v1012 = vsel %vm538, %v1005, 0
          %v1015 = vsel %vm538, %v1006, 0
          %v1018 = vsel %vm538, %v1007, 0
          %v1021 = vsel %vm551, %v987, 0
          %1023 = vmatpush.bf16.msra.mxu0 0
          %1024 = vmatpush.bf16.msra.mxu0 0
          %1025 = vmatpush.bf16.msra.mxu0 0
          %1026 = vmatpush.bf16.msra.mxu0 0
          %1027 = vmatpush.bf16.msra.mxu0 0
          %1028 = vmatpush.bf16.msra.mxu0 0
          %1029 = vmatpush.bf16.msra.mxu0 0
          %1030 = vmatpush.bf16.msra.mxu0 %v1021
          %1031 = vmatmul.bf16.gmra.mxu0 %v1009
          %v1032 = vpop.f32.mrf.mxu0
          %v1033 = vadd.f32 0.0, %v1032
          %v1034 = vpop.f32.mrf.mxu0
          %v1035 = vadd.f32 0.0, %v1034
          %1036 = vmatmul.bf16.gmra.mxu0 %v1012
          %v1037 = vpop.f32.mrf.mxu0
          %v1038 = vadd.f32 0.0, %v1037
          %v1039 = vpop.f32.mrf.mxu0
          %v1040 = vadd.f32 0.0, %v1039
          %1041 = vmatmul.bf16.gmra.mxu0 %v1015
          %v1042 = vpop.f32.mrf.mxu0
          %v1043 = vadd.f32 0.0, %v1042
          %v1044 = vpop.f32.mrf.mxu0
          %v1045 = vadd.f32 0.0, %v1044
          %1046 = vmatmul.bf16.gmra.mxu0 %v1018
          %v1047 = vpop.f32.mrf.mxu0
          %v1048 = vadd.f32 0.0, %v1047
          %v1049 = vpop.f32.mrf.mxu0
          %v1050 = vadd.f32 0.0, %v1049
          %1051 = vdwg.mxu0
          %v1052 = vadd.f32 %v975, %v1033
          %v1053 = vadd.f32 %v976, %v1035
          %v1054 = vadd.f32 %v977, %v1038
          %v1055 = vadd.f32 %v978, %v1040
          %v1056 = vadd.f32 %v979, %v1043
          %v1057 = vadd.f32 %v980, %v1045
          %v1058 = vadd.f32 %v981, %v1048
          %v1059 = vadd.f32 %v982, %v1050
          %1060 = vst.msk [vmem:[#allocation3] sm:$0xff] %vm592, %v1052
          %1061 = vst.msk [vmem:[#allocation3 + $0x8] sm:$0xff] %vm592, %v1053
          %1062 = vst.msk [vmem:[#allocation3 + $0x10] sm:$0xff] %vm592, %v1054
          %1063 = vst.msk [vmem:[#allocation3 + $0x18] sm:$0xff] %vm592, %v1055
          %1064 = vst.msk [vmem:[#allocation3 + $0x20] sm:$0xff] %vm592, %v1056
          %1065 = vst.msk [vmem:[#allocation3 + $0x28] sm:$0xff] %vm592, %v1057
          %1066 = vst.msk [vmem:[#allocation3 + $0x30] sm:$0xff] %vm592, %v1058
          %1067 = vst.msk [vmem:[#allocation3 + $0x38] sm:$0xff] %vm592, %v1059
          %v1068 = vld [vmem:[%s442] sm:$0xf]
          %v1069 = vld [vmem:[%s442 + $0x4] sm:$0x1]
          %v1070 = vld [vmem:[%s442 + $0x8] sm:$0xf]
          %v1071 = vld [vmem:[%s442 + $0xc] sm:$0x1]
          %v1072 = vld [vmem:[%s442 + $0x10] sm:$0xf]
          %v1073 = vld [vmem:[%s442 + $0x14] sm:$0x1]
          %v1074 = vld [vmem:[%s442 + $0x18] sm:$0xf]
          %v1075 = vld [vmem:[%s442 + $0x1c] sm:$0x1]
          %v1076 = vld [vmem:[%s442 + $0x20] sm:$0xf]
          %v1077 = vld [vmem:[%s442 + $0x24] sm:$0x1]
          %v1078 = vld [vmem:[%s442 + $0x28] sm:$0xf]
          %v1079 = vld [vmem:[%s442 + $0x2c] sm:$0x1]
          %v1080 = vld [vmem:[%s442 + $0x30] sm:$0xf]
          %v1081 = vld [vmem:[%s442 + $0x34] sm:$0x1]
          %v1082 = vld [vmem:[%s442 + $0x38] sm:$0xf]
          %v1083 = vld [vmem:[%s442 + $0x3c] sm:$0x1]
          %v1084 = vld [vmem:[#allocation3] sm:$0xff]
          %v1085 = vld [vmem:[#allocation3 + $0x8] sm:$0xff]
          %v1086 = vld [vmem:[#allocation3 + $0x10] sm:$0xff]
          %v1087 = vld [vmem:[#allocation3 + $0x18] sm:$0xff]
          %v1088 = vld [vmem:[#allocation3 + $0x20] sm:$0xff]
          %v1089 = vld [vmem:[#allocation3 + $0x28] sm:$0xff]
          %v1090 = vld [vmem:[#allocation3 + $0x30] sm:$0xff]
          %v1091 = vld [vmem:[#allocation3 + $0x38] sm:$0xff]
          %v1093 = vshrl.u32 %v1068, 16
          %v1095 = vrot.slane %v1093, 4
          %v1096 = vshll.u32 %v1068, 16
          %v1098 = vrot.slane %v1096, 5
          %v1099 = vor.u32 %v1095, %v1098
          %v1100 = vrot.slane %v1099, 4
          %v1102 = vshll.u32 %v1069, 16
          %v1104 = vrot.slane %v1102, 5
          %v1105 = vsel %vm627, %v1100, %v1104
          %v1107 = vshrl.u32 %v1070, 16
          %v1109 = vrot.slane %v1107, 4
          %v1110 = vshll.u32 %v1070, 16
          %v1112 = vrot.slane %v1110, 5
          %v1113 = vor.u32 %v1109, %v1112
          %v1114 = vrot.slane %v1113, 4
          %v1116 = vshll.u32 %v1071, 16
          %v1118 = vrot.slane %v1116, 5
          %v1119 = vsel %vm627, %v1114, %v1118
          %v1121 = vshrl.u32 %v1072, 16
          %v1123 = vrot.slane %v1121, 4
          %v1124 = vshll.u32 %v1072, 16
          %v1126 = vrot.slane %v1124, 5
          %v1127 = vor.u32 %v1123, %v1126
          %v1128 = vrot.slane %v1127, 4
          %v1130 = vshll.u32 %v1073, 16
          %v1132 = vrot.slane %v1130, 5
          %v1133 = vsel %vm627, %v1128, %v1132
          %v1135 = vshrl.u32 %v1074, 16
          %v1137 = vrot.slane %v1135, 4
          %v1138 = vshll.u32 %v1074, 16
          %v1140 = vrot.slane %v1138, 5
          %v1141 = vor.u32 %v1137, %v1140
          %v1142 = vrot.slane %v1141, 4
          %v1144 = vshll.u32 %v1075, 16
          %v1146 = vrot.slane %v1144, 5
          %v1147 = vsel %vm627, %v1142, %v1146
          %v1149 = vshrl.u32 %v1076, 16
          %v1151 = vrot.slane %v1149, 4
          %v1152 = vshll.u32 %v1076, 16
          %v1154 = vrot.slane %v1152, 5
          %v1155 = vor.u32 %v1151, %v1154
          %v1156 = vrot.slane %v1155, 4
          %v1158 = vshll.u32 %v1077, 16
          %v1160 = vrot.slane %v1158, 5
          %v1161 = vsel %vm627, %v1156, %v1160
          %v1163 = vshrl.u32 %v1078, 16
          %v1165 = vrot.slane %v1163, 4
          %v1166 = vshll.u32 %v1078, 16
          %v1168 = vrot.slane %v1166, 5
          %v1169 = vor.u32 %v1165, %v1168
          %v1170 = vrot.slane %v1169, 4
          %v1172 = vshll.u32 %v1079, 16
          %v1174 = vrot.slane %v1172, 5
          %v1175 = vsel %vm627, %v1170, %v1174
          %v1177 = vshrl.u32 %v1080, 16
          %v1179 = vrot.slane %v1177, 4
          %v1180 = vshll.u32 %v1080, 16
          %v1182 = vrot.slane %v1180, 5
          %v1183 = vor.u32 %v1179, %v1182
          %v1184 = vrot.slane %v1183, 4
          %v1186 = vshll.u32 %v1081, 16
          %v1188 = vrot.slane %v1186, 5
          %v1189 = vsel %vm627, %v1184, %v1188
          %v1191 = vshrl.u32 %v1082, 16
          %v1193 = vrot.slane %v1191, 4
          %v1194 = vshll.u32 %v1082, 16
          %v1196 = vrot.slane %v1194, 5
          %v1197 = vor.u32 %v1193, %v1196
          %v1198 = vrot.slane %v1197, 4
          %v1200 = vshll.u32 %v1083, 16
          %v1202 = vrot.slane %v1200, 5
          %v1203 = vsel %vm627, %v1198, %v1202
          %s1204 = sadd.s32 1, %s984
          %s1205 = smul.addr %s1204, 2
          %s1206 = scalar_lea.vmem %s1, %s1205
          %v1207 = vld [vmem:[%s1206] sm:$0x3]
          %v1208 = vunpack.c.l.b16 %v1105
          %v1209 = vunpack.c.l.b16 %v1119
          %v1210 = vunpack.c.l.b16 %v1133
          %v1211 = vunpack.c.l.b16 %v1147
          %v1212 = vunpack.c.l.b16 %v1161
          %v1213 = vunpack.c.l.b16 %v1175
          %v1214 = vunpack.c.l.b16 %v1189
          %v1215 = vunpack.c.l.b16 %v1203
          %v1216 = vpack.c.b16 %v1209, %v1208
          %v1217 = vpack.c.b16 %v1211, %v1210
          %v1218 = vpack.c.b16 %v1213, %v1212
          %v1219 = vpack.c.b16 %v1215, %v1214
          %v1221 = vsel %vm538, %v1216, 0
          %v1224 = vsel %vm538, %v1217, 0
          %v1227 = vsel %vm538, %v1218, 0
          %v1230 = vsel %vm538, %v1219, 0
          %v1233 = vsel %vm551, %v1207, 0
          %1235 = vmatpush.bf16.msra.mxu0 0
          %1236 = vmatpush.bf16.msra.mxu0 0
          %1237 = vmatpush.bf16.msra.mxu0 0
          %1238 = vmatpush.bf16.msra.mxu0 0
          %1239 = vmatpush.bf16.msra.mxu0 0
          %1240 = vmatpush.bf16.msra.mxu0 0
          %1241 = vmatpush.bf16.msra.mxu0 0
          %1242 = vmatpush.bf16.msra.mxu0 %v1233
          %1243 = vmatmul.bf16.gmra.mxu0 %v1221
          %v1244 = vpop.f32.mrf.mxu0
          %v1245 = vadd.f32 0.0, %v1244
          %v1246 = vpop.f32.mrf.mxu0
          %v1247 = vadd.f32 0.0, %v1246
          %1248 = vmatmul.bf16.gmra.mxu0 %v1224
          %v1249 = vpop.f32.mrf.mxu0
          %v1250 = vadd.f32 0.0, %v1249
          %v1251 = vpop.f32.mrf.mxu0
          %v1252 = vadd.f32 0.0, %v1251
          %1253 = vmatmul.bf16.gmra.mxu0 %v1227
          %v1254 = vpop.f32.mrf.mxu0
          %v1255 = vadd.f32 0.0, %v1254
          %v1256 = vpop.f32.mrf.mxu0
          %v1257 = vadd.f32 0.0, %v1256
          %1258 = vmatmul.bf16.gmra.mxu0 %v1230
          %v1259 = vpop.f32.mrf.mxu0
          %v1260 = vadd.f32 0.0, %v1259
          %v1261 = vpop.f32.mrf.mxu0
          %v1262 = vadd.f32 0.0, %v1261
          %1263 = vdwg.mxu0
          %v1264 = vadd.f32 %v1084, %v1245
          %v1265 = vadd.f32 %v1085, %v1247
          %v1266 = vadd.f32 %v1086, %v1250
          %v1267 = vadd.f32 %v1087, %v1252
          %v1268 = vadd.f32 %v1088, %v1255
          %v1269 = vadd.f32 %v1089, %v1257
          %v1270 = vadd.f32 %v1090, %v1260
          %v1271 = vadd.f32 %v1091, %v1262
          %1272 = vst.msk [vmem:[#allocation3] sm:$0xff] %vm592, %v1264
          %1273 = vst.msk [vmem:[#allocation3 + $0x8] sm:$0xff] %vm592, %v1265
          %1274 = vst.msk [vmem:[#allocation3 + $0x10] sm:$0xff] %vm592, %v1266
          %1275 = vst.msk [vmem:[#allocation3 + $0x18] sm:$0xff] %vm592, %v1267
          %1276 = vst.msk [vmem:[#allocation3 + $0x20] sm:$0xff] %vm592, %v1268
          %1277 = vst.msk [vmem:[#allocation3 + $0x28] sm:$0xff] %vm592, %v1269
          %1278 = vst.msk [vmem:[#allocation3 + $0x30] sm:$0xff] %vm592, %v1270
          %1279 = vst.msk [vmem:[#allocation3 + $0x38] sm:$0xff] %vm592, %v1271
          %v1280 = vld [vmem:[%s442] sm:$0xe]
          %v1281 = vld [vmem:[%s442 + $0x4] sm:$0x1]
          %v1282 = vld [vmem:[%s442 + $0x8] sm:$0xe]
          %v1283 = vld [vmem:[%s442 + $0xc] sm:$0x1]
          %v1284 = vld [vmem:[%s442 + $0x10] sm:$0xe]
          %v1285 = vld [vmem:[%s442 + $0x14] sm:$0x1]
          %v1286 = vld [vmem:[%s442 + $0x18] sm:$0xe]
          %v1287 = vld [vmem:[%s442 + $0x1c] sm:$0x1]
          %v1288 = vld [vmem:[%s442 + $0x20] sm:$0xe]
          %v1289 = vld [vmem:[%s442 + $0x24] sm:$0x1]
          %v1290 = vld [vmem:[%s442 + $0x28] sm:$0xe]
          %v1291 = vld [vmem:[%s442 + $0x2c] sm:$0x1]
          %v1292 = vld [vmem:[%s442 + $0x30] sm:$0xe]
          %v1293 = vld [vmem:[%s442 + $0x34] sm:$0x1]
          %v1294 = vld [vmem:[%s442 + $0x38] sm:$0xe]
          %v1295 = vld [vmem:[%s442 + $0x3c] sm:$0x1]
          %v1296 = vld [vmem:[#allocation3] sm:$0xff]
          %v1297 = vld [vmem:[#allocation3 + $0x8] sm:$0xff]
          %v1298 = vld [vmem:[#allocation3 + $0x10] sm:$0xff]
          %v1299 = vld [vmem:[#allocation3 + $0x18] sm:$0xff]
          %v1300 = vld [vmem:[#allocation3 + $0x20] sm:$0xff]
          %v1301 = vld [vmem:[#allocation3 + $0x28] sm:$0xff]
          %v1302 = vld [vmem:[#allocation3 + $0x30] sm:$0xff]
          %v1303 = vld [vmem:[#allocation3 + $0x38] sm:$0xff]
          %v1320 = vrot.slane %v1280, 5
          %v1321 = vrot.slane %v1320, 4
          %v1322 = vrot.slane %v1281, 5
          %v1323 = vsel %vm858, %v1321, %v1322
          %v1324 = vrot.slane %v1282, 5
          %v1325 = vrot.slane %v1324, 4
          %v1326 = vrot.slane %v1283, 5
          %v1327 = vsel %vm858, %v1325, %v1326
          %v1328 = vrot.slane %v1284, 5
          %v1329 = vrot.slane %v1328, 4
          %v1330 = vrot.slane %v1285, 5
          %v1331 = vsel %vm858, %v1329, %v1330
          %v1332 = vrot.slane %v1286, 5
          %v1333 = vrot.slane %v1332, 4
          %v1334 = vrot.slane %v1287, 5
          %v1335 = vsel %vm858, %v1333, %v1334
          %v1336 = vrot.slane %v1288, 5
          %v1337 = vrot.slane %v1336, 4
          %v1338 = vrot.slane %v1289, 5
          %v1339 = vsel %vm858, %v1337, %v1338
          %v1340 = vrot.slane %v1290, 5
          %v1341 = vrot.slane %v1340, 4
          %v1342 = vrot.slane %v1291, 5
          %v1343 = vsel %vm858, %v1341, %v1342
          %v1344 = vrot.slane %v1292, 5
          %v1345 = vrot.slane %v1344, 4
          %v1346 = vrot.slane %v1293, 5
          %v1347 = vsel %vm858, %v1345, %v1346
          %v1348 = vrot.slane %v1294, 5
          %v1349 = vrot.slane %v1348, 4
          %v1350 = vrot.slane %v1295, 5
          %v1351 = vsel %vm858, %v1349, %v1350
          %s1352 = sadd.s32 2, %s984
          %s1353 = smul.addr %s1352, 2
          %s1354 = scalar_lea.vmem %s1, %s1353
          %v1355 = vld [vmem:[%s1354] sm:$0x3]
          %v1356 = vunpack.c.l.b16 %v1323
          %v1357 = vunpack.c.l.b16 %v1327
          %v1358 = vunpack.c.l.b16 %v1331
          %v1359 = vunpack.c.l.b16 %v1335
          %v1360 = vunpack.c.l.b16 %v1339
          %v1361 = vunpack.c.l.b16 %v1343
          %v1362 = vunpack.c.l.b16 %v1347
          %v1363 = vunpack.c.l.b16 %v1351
          %v1364 = vpack.c.b16 %v1357, %v1356
          %v1365 = vpack.c.b16 %v1359, %v1358
          %v1366 = vpack.c.b16 %v1361, %v1360
          %v1367 = vpack.c.b16 %v1363, %v1362
          %v1369 = vsel %vm538, %v1364, 0
          %v1372 = vsel %vm538, %v1365, 0
          %v1375 = vsel %vm538, %v1366, 0
          %v1378 = vsel %vm538, %v1367, 0
          %v1381 = vsel %vm551, %v1355, 0
          %1383 = vmatpush.bf16.msra.mxu0 0
          %1384 = vmatpush.bf16.msra.mxu0 0
          %1385 = vmatpush.bf16.msra.mxu0 0
          %1386 = vmatpush.bf16.msra.mxu0 0
          %1387 = vmatpush.bf16.msra.mxu0 0
          %1388 = vmatpush.bf16.msra.mxu0 0
          %1389 = vmatpush.bf16.msra.mxu0 0
          %1390 = vmatpush.bf16.msra.mxu0 %v1381
          %1391 = vmatmul.bf16.gmra.mxu0 %v1369
          %v1392 = vpop.f32.mrf.mxu0
          %v1393 = vadd.f32 0.0, %v1392
          %v1394 = vpop.f32.mrf.mxu0
          %v1395 = vadd.f32 0.0, %v1394
          %1396 = vmatmul.bf16.gmra.mxu0 %v1372
          %v1397 = vpop.f32.mrf.mxu0
          %v1398 = vadd.f32 0.0, %v1397
          %v1399 = vpop.f32.mrf.mxu0
          %v1400 = vadd.f32 0.0, %v1399
          %1401 = vmatmul.bf16.gmra.mxu0 %v1375
          %v1402 = vpop.f32.mrf.mxu0
          %v1403 = vadd.f32 0.0, %v1402
          %v1404 = vpop.f32.mrf.mxu0
          %v1405 = vadd.f32 0.0, %v1404
          %1406 = vmatmul.bf16.gmra.mxu0 %v1378
          %v1407 = vpop.f32.mrf.mxu0
          %v1408 = vadd.f32 0.0, %v1407
          %v1409 = vpop.f32.mrf.mxu0
          %v1410 = vadd.f32 0.0, %v1409
          %1411 = vdwg.mxu0
          %v1412 = vadd.f32 %v1296, %v1393
          %v1413 = vadd.f32 %v1297, %v1395
          %v1414 = vadd.f32 %v1298, %v1398
          %v1415 = vadd.f32 %v1299, %v1400
          %v1416 = vadd.f32 %v1300, %v1403
          %v1417 = vadd.f32 %v1301, %v1405
          %v1418 = vadd.f32 %v1302, %v1408
          %v1419 = vadd.f32 %v1303, %v1410
          %1420 = vst.msk [vmem:[#allocation3] sm:$0xff] %vm592, %v1412
          %1421 = vst.msk [vmem:[#allocation3 + $0x8] sm:$0xff] %vm592, %v1413
          %1422 = vst.msk [vmem:[#allocation3 + $0x10] sm:$0xff] %vm592, %v1414
          %1423 = vst.msk [vmem:[#allocation3 + $0x18] sm:$0xff] %vm592, %v1415
          %1424 = vst.msk [vmem:[#allocation3 + $0x20] sm:$0xff] %vm592, %v1416
          %1425 = vst.msk [vmem:[#allocation3 + $0x28] sm:$0xff] %vm592, %v1417
          %1426 = vst.msk [vmem:[#allocation3 + $0x30] sm:$0xff] %vm592, %v1418
          %1427 = vst.msk [vmem:[#allocation3 + $0x38] sm:$0xff] %vm592, %v1419
          %s1428 = scalar_lea.vmem [#allocation2], 16
          %v1429 = vld [vmem:[%s1428] sm:$0xf]
          %v1430 = vld [vmem:[%s1428 + $0x8] sm:$0xf]
          %v1431 = vld [vmem:[%s1428 + $0x10] sm:$0xf]
          %v1432 = vld [vmem:[%s1428 + $0x18] sm:$0xf]
          %v1433 = vld [vmem:[%s1428 + $0x20] sm:$0xf]
          %v1434 = vld [vmem:[%s1428 + $0x28] sm:$0xf]
          %v1435 = vld [vmem:[%s1428 + $0x30] sm:$0xf]
          %v1436 = vld [vmem:[%s1428 + $0x38] sm:$0xf]
          %v1437 = vld [vmem:[#allocation3] sm:$0xff]
          %v1438 = vld [vmem:[#allocation3 + $0x8] sm:$0xff]
          %v1439 = vld [vmem:[#allocation3 + $0x10] sm:$0xff]
          %v1440 = vld [vmem:[#allocation3 + $0x18] sm:$0xff]
          %v1441 = vld [vmem:[#allocation3 + $0x20] sm:$0xff]
          %v1442 = vld [vmem:[#allocation3 + $0x28] sm:$0xff]
          %v1443 = vld [vmem:[#allocation3 + $0x30] sm:$0xff]
          %v1444 = vld [vmem:[#allocation3 + $0x38] sm:$0xff]
          %s1445 = sadd.s32 %s513, 2
          %s1446 = smul.u32 %s1445, 3
          %s1447 = smul.addr %s1446, 2
          %s1448 = scalar_lea.vmem %s1, %s1447
          %v1449 = vld [vmem:[%s1448] sm:$0x3]
          %v1458 = vunpack.c.l.b16 %v1429
          %v1459 = vunpack.c.l.b16 %v1430
          %v1460 = vunpack.c.l.b16 %v1431
          %v1461 = vunpack.c.l.b16 %v1432
          %v1462 = vunpack.c.l.b16 %v1433
          %v1463 = vunpack.c.l.b16 %v1434
          %v1464 = vunpack.c.l.b16 %v1435
          %v1465 = vunpack.c.l.b16 %v1436
          %v1466 = vpack.c.b16 %v1459, %v1458
          %v1467 = vpack.c.b16 %v1461, %v1460
          %v1468 = vpack.c.b16 %v1463, %v1462
          %v1469 = vpack.c.b16 %v1465, %v1464
          %v1471 = vsel %vm538, %v1466, 0
          %v1474 = vsel %vm538, %v1467, 0
          %v1477 = vsel %vm538, %v1468, 0
          %v1480 = vsel %vm538, %v1469, 0
          %v1483 = vsel %vm551, %v1449, 0
          %1485 = vmatpush.bf16.msra.mxu0 0
          %1486 = vmatpush.bf16.msra.mxu0 0
          %1487 = vmatpush.bf16.msra.mxu0 0
          %1488 = vmatpush.bf16.msra.mxu0 0
          %1489 = vmatpush.bf16.msra.mxu0 0
          %1490 = vmatpush.bf16.msra.mxu0 0
          %1491 = vmatpush.bf16.msra.mxu0 0
          %1492 = vmatpush.bf16.msra.mxu0 %v1483
          %1493 = vmatmul.bf16.gmra.mxu0 %v1471
          %v1494 = vpop.f32.mrf.mxu0
          %v1495 = vadd.f32 0.0, %v1494
          %v1496 = vpop.f32.mrf.mxu0
          %v1497 = vadd.f32 0.0, %v1496
          %1498 = vmatmul.bf16.gmra.mxu0 %v1474
          %v1499 = vpop.f32.mrf.mxu0
          %v1500 = vadd.f32 0.0, %v1499
          %v1501 = vpop.f32.mrf.mxu0
          %v1502 = vadd.f32 0.0, %v1501
          %1503 = vmatmul.bf16.gmra.mxu0 %v1477
          %v1504 = vpop.f32.mrf.mxu0
          %v1505 = vadd.f32 0.0, %v1504
          %v1506 = vpop.f32.mrf.mxu0
          %v1507 = vadd.f32 0.0, %v1506
          %1508 = vmatmul.bf16.gmra.mxu0 %v1480
          %v1509 = vpop.f32.mrf.mxu0
          %v1510 = vadd.f32 0.0, %v1509
          %v1511 = vpop.f32.mrf.mxu0
          %v1512 = vadd.f32 0.0, %v1511
          %1513 = vdwg.mxu0
          %v1514 = vadd.f32 %v1437, %v1495
          %v1515 = vadd.f32 %v1438, %v1497
          %v1516 = vadd.f32 %v1439, %v1500
          %v1517 = vadd.f32 %v1440, %v1502
          %v1518 = vadd.f32 %v1441, %v1505
          %v1519 = vadd.f32 %v1442, %v1507
          %v1520 = vadd.f32 %v1443, %v1510
          %v1521 = vadd.f32 %v1444, %v1512
          %1522 = vst.msk [vmem:[#allocation3] sm:$0xff] %vm592, %v1514
          %1523 = vst.msk [vmem:[#allocation3 + $0x8] sm:$0xff] %vm592, %v1515
          %1524 = vst.msk [vmem:[#allocation3 + $0x10] sm:$0xff] %vm592, %v1516
          %1525 = vst.msk [vmem:[#allocation3 + $0x18] sm:$0xff] %vm592, %v1517
          %1526 = vst.msk [vmem:[#allocation3 + $0x20] sm:$0xff] %vm592, %v1518
          %1527 = vst.msk [vmem:[#allocation3 + $0x28] sm:$0xff] %vm592, %v1519
          %1528 = vst.msk [vmem:[#allocation3 + $0x30] sm:$0xff] %vm592, %v1520
          %1529 = vst.msk [vmem:[#allocation3 + $0x38] sm:$0xff] %vm592, %v1521
          %v1530 = vld [vmem:[%s1428] sm:$0xf]
          %v1531 = vld [vmem:[%s1428 + $0x4] sm:$0x1]
          %v1532 = vld [vmem:[%s1428 + $0x8] sm:$0xf]
          %v1533 = vld [vmem:[%s1428 + $0xc] sm:$0x1]
          %v1534 = vld [vmem:[%s1428 + $0x10] sm:$0xf]
          %v1535 = vld [vmem:[%s1428 + $0x14] sm:$0x1]
          %v1536 = vld [vmem:[%s1428 + $0x18] sm:$0xf]
          %v1537 = vld [vmem:[%s1428 + $0x1c] sm:$0x1]
          %v1538 = vld [vmem:[%s1428 + $0x20] sm:$0xf]
          %v1539 = vld [vmem:[%s1428 + $0x24] sm:$0x1]
          %v1540 = vld [vmem:[%s1428 + $0x28] sm:$0xf]
          %v1541 = vld [vmem:[%s1428 + $0x2c] sm:$0x1]
          %v1542 = vld [vmem:[%s1428 + $0x30] sm:$0xf]
          %v1543 = vld [vmem:[%s1428 + $0x34] sm:$0x1]
          %v1544 = vld [vmem:[%s1428 + $0x38] sm:$0xf]
          %v1545 = vld [vmem:[%s1428 + $0x3c] sm:$0x1]
          %v1546 = vld [vmem:[#allocation3] sm:$0xff]
          %v1547 = vld [vmem:[#allocation3 + $0x8] sm:$0xff]
          %v1548 = vld [vmem:[#allocation3 + $0x10] sm:$0xff]
          %v1549 = vld [vmem:[#allocation3 + $0x18] sm:$0xff]
          %v1550 = vld [vmem:[#allocation3 + $0x20] sm:$0xff]
          %v1551 = vld [vmem:[#allocation3 + $0x28] sm:$0xff]
          %v1552 = vld [vmem:[#allocation3 + $0x30] sm:$0xff]
          %v1553 = vld [vmem:[#allocation3 + $0x38] sm:$0xff]
          %v1555 = vshrl.u32 %v1530, 16
          %v1557 = vrot.slane %v1555, 4
          %v1558 = vshll.u32 %v1530, 16
          %v1560 = vrot.slane %v1558, 5
          %v1561 = vor.u32 %v1557, %v1560
          %v1562 = vrot.slane %v1561, 4
          %v1564 = vshll.u32 %v1531, 16
          %v1566 = vrot.slane %v1564, 5
          %v1567 = vsel %vm627, %v1562, %v1566
          %v1569 = vshrl.u32 %v1532, 16
          %v1571 = vrot.slane %v1569, 4
          %v1572 = vshll.u32 %v1532, 16
          %v1574 = vrot.slane %v1572, 5
          %v1575 = vor.u32 %v1571, %v1574
          %v1576 = vrot.slane %v1575, 4
          %v1578 = vshll.u32 %v1533, 16
          %v1580 = vrot.slane %v1578, 5
          %v1581 = vsel %vm627, %v1576, %v1580
          %v1583 = vshrl.u32 %v1534, 16
          %v1585 = vrot.slane %v1583, 4
          %v1586 = vshll.u32 %v1534, 16
          %v1588 = vrot.slane %v1586, 5
          %v1589 = vor.u32 %v1585, %v1588
          %v1590 = vrot.slane %v1589, 4
          %v1592 = vshll.u32 %v1535, 16
          %v1594 = vrot.slane %v1592, 5
          %v1595 = vsel %vm627, %v1590, %v1594
          %v1597 = vshrl.u32 %v1536, 16
          %v1599 = vrot.slane %v1597, 4
          %v1600 = vshll.u32 %v1536, 16
          %v1602 = vrot.slane %v1600, 5
          %v1603 = vor.u32 %v1599, %v1602
          %v1604 = vrot.slane %v1603, 4
          %v1606 = vshll.u32 %v1537, 16
          %v1608 = vrot.slane %v1606, 5
          %v1609 = vsel %vm627, %v1604, %v1608
          %v1611 = vshrl.u32 %v1538, 16
          %v1613 = vrot.slane %v1611, 4
          %v1614 = vshll.u32 %v1538, 16
          %v1616 = vrot.slane %v1614, 5
          %v1617 = vor.u32 %v1613, %v1616
          %v1618 = vrot.slane %v1617, 4
          %v1620 = vshll.u32 %v1539, 16
          %v1622 = vrot.slane %v1620, 5
          %v1623 = vsel %vm627, %v1618, %v1622
          %v1625 = vshrl.u32 %v1540, 16
          %v1627 = vrot.slane %v1625, 4
          %v1628 = vshll.u32 %v1540, 16
          %v1630 = vrot.slane %v1628, 5
          %v1631 = vor.u32 %v1627, %v1630
          %v1632 = vrot.slane %v1631, 4
          %v1634 = vshll.u32 %v1541, 16
          %v1636 = vrot.slane %v1634, 5
          %v1637 = vsel %vm627, %v1632, %v1636
          %v1639 = vshrl.u32 %v1542, 16
          %v1641 = vrot.slane %v1639, 4
          %v1642 = vshll.u32 %v1542, 16
          %v1644 = vrot.slane %v1642, 5
          %v1645 = vor.u32 %v1641, %v1644
          %v1646 = vrot.slane %v1645, 4
          %v1648 = vshll.u32 %v1543, 16
          %v1650 = vrot.slane %v1648, 5
          %v1651 = vsel %vm627, %v1646, %v1650
          %v1653 = vshrl.u32 %v1544, 16
          %v1655 = vrot.slane %v1653, 4
          %v1656 = vshll.u32 %v1544, 16
          %v1658 = vrot.slane %v1656, 5
          %v1659 = vor.u32 %v1655, %v1658
          %v1660 = vrot.slane %v1659, 4
          %v1662 = vshll.u32 %v1545, 16
          %v1664 = vrot.slane %v1662, 5
          %v1665 = vsel %vm627, %v1660, %v1664
          %s1666 = sadd.s32 1, %s1446
          %s1667 = smul.addr %s1666, 2
          %s1668 = scalar_lea.vmem %s1, %s1667
          %v1669 = vld [vmem:[%s1668] sm:$0x3]
          %v1670 = vunpack.c.l.b16 %v1567
          %v1671 = vunpack.c.l.b16 %v1581
          %v1672 = vunpack.c.l.b16 %v1595
          %v1673 = vunpack.c.l.b16 %v1609
          %v1674 = vunpack.c.l.b16 %v1623
          %v1675 = vunpack.c.l.b16 %v1637
          %v1676 = vunpack.c.l.b16 %v1651
          %v1677 = vunpack.c.l.b16 %v1665
          %v1678 = vpack.c.b16 %v1671, %v1670
          %v1679 = vpack.c.b16 %v1673, %v1672
          %v1680 = vpack.c.b16 %v1675, %v1674
          %v1681 = vpack.c.b16 %v1677, %v1676
          %v1683 = vsel %vm538, %v1678, 0
          %v1686 = vsel %vm538, %v1679, 0
          %v1689 = vsel %vm538, %v1680, 0
          %v1692 = vsel %vm538, %v1681, 0
          %v1695 = vsel %vm551, %v1669, 0
          %1697 = vmatpush.bf16.msra.mxu0 0
          %1698 = vmatpush.bf16.msra.mxu0 0
          %1699 = vmatpush.bf16.msra.mxu0 0
          %1700 = vmatpush.bf16.msra.mxu0 0
          %1701 = vmatpush.bf16.msra.mxu0 0
          %1702 = vmatpush.bf16.msra.mxu0 0
          %1703 = vmatpush.bf16.msra.mxu0 0
          %1704 = vmatpush.bf16.msra.mxu0 %v1695
          %1705 = vmatmul.bf16.gmra.mxu0 %v1683
          %v1706 = vpop.f32.mrf.mxu0
          %v1707 = vadd.f32 0.0, %v1706
          %v1708 = vpop.f32.mrf.mxu0
          %v1709 = vadd.f32 0.0, %v1708
          %1710 = vmatmul.bf16.gmra.mxu0 %v1686
          %v1711 = vpop.f32.mrf.mxu0
          %v1712 = vadd.f32 0.0, %v1711
          %v1713 = vpop.f32.mrf.mxu0
          %v1714 = vadd.f32 0.0, %v1713
          %1715 = vmatmul.bf16.gmra.mxu0 %v1689
          %v1716 = vpop.f32.mrf.mxu0
          %v1717 = vadd.f32 0.0, %v1716
          %v1718 = vpop.f32.mrf.mxu0
          %v1719 = vadd.f32 0.0, %v1718
          %1720 = vmatmul.bf16.gmra.mxu0 %v1692
          %v1721 = vpop.f32.mrf.mxu0
          %v1722 = vadd.f32 0.0, %v1721
          %v1723 = vpop.f32.mrf.mxu0
          %v1724 = vadd.f32 0.0, %v1723
          %1725 = vdwg.mxu0
          %v1726 = vadd.f32 %v1546, %v1707
          %v1727 = vadd.f32 %v1547, %v1709
          %v1728 = vadd.f32 %v1548, %v1712
          %v1729 = vadd.f32 %v1549, %v1714
          %v1730 = vadd.f32 %v1550, %v1717
          %v1731 = vadd.f32 %v1551, %v1719
          %v1732 = vadd.f32 %v1552, %v1722
          %v1733 = vadd.f32 %v1553, %v1724
          %1734 = vst.msk [vmem:[#allocation3] sm:$0xff] %vm592, %v1726
          %1735 = vst.msk [vmem:[#allocation3 + $0x8] sm:$0xff] %vm592, %v1727
          %1736 = vst.msk [vmem:[#allocation3 + $0x10] sm:$0xff] %vm592, %v1728
          %1737 = vst.msk [vmem:[#allocation3 + $0x18] sm:$0xff] %vm592, %v1729
          %1738 = vst.msk [vmem:[#allocation3 + $0x20] sm:$0xff] %vm592, %v1730
          %1739 = vst.msk [vmem:[#allocation3 + $0x28] sm:$0xff] %vm592, %v1731
          %1740 = vst.msk [vmem:[#allocation3 + $0x30] sm:$0xff] %vm592, %v1732
          %1741 = vst.msk [vmem:[#allocation3 + $0x38] sm:$0xff] %vm592, %v1733
          %v1742 = vld [vmem:[%s1428] sm:$0xe]
          %v1743 = vld [vmem:[%s1428 + $0x4] sm:$0x1]
          %v1744 = vld [vmem:[%s1428 + $0x8] sm:$0xe]
          %v1745 = vld [vmem:[%s1428 + $0xc] sm:$0x1]
          %v1746 = vld [vmem:[%s1428 + $0x10] sm:$0xe]
          %v1747 = vld [vmem:[%s1428 + $0x14] sm:$0x1]
          %v1748 = vld [vmem:[%s1428 + $0x18] sm:$0xe]
          %v1749 = vld [vmem:[%s1428 + $0x1c] sm:$0x1]
          %v1750 = vld [vmem:[%s1428 + $0x20] sm:$0xe]
          %v1751 = vld [vmem:[%s1428 + $0x24] sm:$0x1]
          %v1752 = vld [vmem:[%s1428 + $0x28] sm:$0xe]
          %v1753 = vld [vmem:[%s1428 + $0x2c] sm:$0x1]
          %v1754 = vld [vmem:[%s1428 + $0x30] sm:$0xe]
          %v1755 = vld [vmem:[%s1428 + $0x34] sm:$0x1]
          %v1756 = vld [vmem:[%s1428 + $0x38] sm:$0xe]
          %v1757 = vld [vmem:[%s1428 + $0x3c] sm:$0x1]
          %v1758 = vld [vmem:[#allocation3] sm:$0xff]
          %v1759 = vld [vmem:[#allocation3 + $0x8] sm:$0xff]
          %v1760 = vld [vmem:[#allocation3 + $0x10] sm:$0xff]
          %v1761 = vld [vmem:[#allocation3 + $0x18] sm:$0xff]
          %v1762 = vld [vmem:[#allocation3 + $0x20] sm:$0xff]
          %v1763 = vld [vmem:[#allocation3 + $0x28] sm:$0xff]
          %v1764 = vld [vmem:[#allocation3 + $0x30] sm:$0xff]
          %v1765 = vld [vmem:[#allocation3 + $0x38] sm:$0xff]
          %v1782 = vrot.slane %v1742, 5
          %v1783 = vrot.slane %v1782, 4
          %v1784 = vrot.slane %v1743, 5
          %v1785 = vsel %vm858, %v1783, %v1784
          %v1786 = vrot.slane %v1744, 5
          %v1787 = vrot.slane %v1786, 4
          %v1788 = vrot.slane %v1745, 5
          %v1789 = vsel %vm858, %v1787, %v1788
          %v1790 = vrot.slane %v1746, 5
          %v1791 = vrot.slane %v1790, 4
          %v1792 = vrot.slane %v1747, 5
          %v1793 = vsel %vm858, %v1791, %v1792
          %v1794 = vrot.slane %v1748, 5
          %v1795 = vrot.slane %v1794, 4
          %v1796 = vrot.slane %v1749, 5
          %v1797 = vsel %vm858, %v1795, %v1796
          %v1798 = vrot.slane %v1750, 5
          %v1799 = vrot.slane %v1798, 4
          %v1800 = vrot.slane %v1751, 5
          %v1801 = vsel %vm858, %v1799, %v1800
          %v1802 = vrot.slane %v1752, 5
          %v1803 = vrot.slane %v1802, 4
          %v1804 = vrot.slane %v1753, 5
          %v1805 = vsel %vm858, %v1803, %v1804
          %v1806 = vrot.slane %v1754, 5
          %v1807 = vrot.slane %v1806, 4
          %v1808 = vrot.slane %v1755, 5
          %v1809 = vsel %vm858, %v1807, %v1808
          %v1810 = vrot.slane %v1756, 5
          %v1811 = vrot.slane %v1810, 4
          %v1812 = vrot.slane %v1757, 5
          %v1813 = vsel %vm858, %v1811, %v1812
          %s1814 = sadd.s32 2, %s1446
          %s1815 = smul.addr %s1814, 2
          %s1816 = scalar_lea.vmem %s1, %s1815
          %v1817 = vld [vmem:[%s1816] sm:$0x3]
          %v1818 = vunpack.c.l.b16 %v1785
          %v1819 = vunpack.c.l.b16 %v1789
          %v1820 = vunpack.c.l.b16 %v1793
          %v1821 = vunpack.c.l.b16 %v1797
          %v1822 = vunpack.c.l.b16 %v1801
          %v1823 = vunpack.c.l.b16 %v1805
          %v1824 = vunpack.c.l.b16 %v1809
          %v1825 = vunpack.c.l.b16 %v1813
          %v1826 = vpack.c.b16 %v1819, %v1818
          %v1827 = vpack.c.b16 %v1821, %v1820
          %v1828 = vpack.c.b16 %v1823, %v1822
          %v1829 = vpack.c.b16 %v1825, %v1824
          %v1831 = vsel %vm538, %v1826, 0
          %v1834 = vsel %vm538, %v1827, 0
          %v1837 = vsel %vm538, %v1828, 0
          %v1840 = vsel %vm538, %v1829, 0
          %v1843 = vsel %vm551, %v1817, 0
          %1845 = vmatpush.bf16.msra.mxu0 0
          %1846 = vmatpush.bf16.msra.mxu0 0
          %1847 = vmatpush.bf16.msra.mxu0 0
          %1848 = vmatpush.bf16.msra.mxu0 0
          %1849 = vmatpush.bf16.msra.mxu0 0
          %1850 = vmatpush.bf16.msra.mxu0 0
          %1851 = vmatpush.bf16.msra.mxu0 0
          %1852 = vmatpush.bf16.msra.mxu0 %v1843
          %1853 = vmatmul.bf16.gmra.mxu0 %v1831
          %v1854 = vpop.f32.mrf.mxu0
          %v1855 = vadd.f32 0.0, %v1854
          %v1856 = vpop.f32.mrf.mxu0
          %v1857 = vadd.f32 0.0, %v1856
          %1858 = vmatmul.bf16.gmra.mxu0 %v1834
          %v1859 = vpop.f32.mrf.mxu0
          %v1860 = vadd.f32 0.0, %v1859
          %v1861 = vpop.f32.mrf.mxu0
          %v1862 = vadd.f32 0.0, %v1861
          %1863 = vmatmul.bf16.gmra.mxu0 %v1837
          %v1864 = vpop.f32.mrf.mxu0
          %v1865 = vadd.f32 0.0, %v1864
          %v1866 = vpop.f32.mrf.mxu0
          %v1867 = vadd.f32 0.0, %v1866
          %1868 = vmatmul.bf16.gmra.mxu0 %v1840
          %v1869 = vpop.f32.mrf.mxu0
          %v1870 = vadd.f32 0.0, %v1869
          %v1871 = vpop.f32.mrf.mxu0
          %v1872 = vadd.f32 0.0, %v1871
          %1873 = vdwg.mxu0
          %v1874 = vadd.f32 %v1758, %v1855
          %v1875 = vadd.f32 %v1759, %v1857
          %v1876 = vadd.f32 %v1760, %v1860
          %v1877 = vadd.f32 %v1761, %v1862
          %v1878 = vadd.f32 %v1762, %v1865
          %v1879 = vadd.f32 %v1763, %v1867
          %v1880 = vadd.f32 %v1764, %v1870
          %v1881 = vadd.f32 %v1765, %v1872
          %1882 = vst.msk [vmem:[#allocation3] sm:$0xff] %vm592, %v1874
          %1883 = vst.msk [vmem:[#allocation3 + $0x8] sm:$0xff] %vm592, %v1875
          %1884 = vst.msk [vmem:[#allocation3 + $0x10] sm:$0xff] %vm592, %v1876
          %1885 = vst.msk [vmem:[#allocation3 + $0x18] sm:$0xff] %vm592, %v1877
          %1886 = vst.msk [vmem:[#allocation3 + $0x20] sm:$0xff] %vm592, %v1878
          %1887 = vst.msk [vmem:[#allocation3 + $0x28] sm:$0xff] %vm592, %v1879
          %1888 = vst.msk [vmem:[#allocation3 + $0x30] sm:$0xff] %vm592, %v1880
          %1889 = vst.msk [vmem:[#allocation3 + $0x38] sm:$0xff] %vm592, %v1881
        $region44: #{tpu_custom_call.1} parent=35 // pred_fallthru
          _
        %p1890 = scmp.eq.s32.totalorder %s25, 2
        // Predicated region
        $region45: #{tpu_custom_call.1} parent=35 // pred_check
          %p1891 = pneg %p1890
        $region46: #{tpu_custom_call.1} parent=35 // pred_check_branch
          %1893 = sbr.rel (%p1891) target = $region48
        $region47: #{tpu_custom_call.1} parent=35 // pred_region
          %v1894 = vld [vmem:[#allocation3] sm:$0xff]
          %v1895 = vld [vmem:[#allocation3 + $0x8] sm:$0xff]
          %v1896 = vld [vmem:[#allocation3 + $0x10] sm:$0xff]
          %v1897 = vld [vmem:[#allocation3 + $0x18] sm:$0xff]
          %v1898 = vld [vmem:[#allocation3 + $0x20] sm:$0xff]
          %v1899 = vld [vmem:[#allocation3 + $0x28] sm:$0xff]
          %v1900 = vld [vmem:[#allocation3 + $0x30] sm:$0xff]
          %v1901 = vld [vmem:[#allocation3 + $0x38] sm:$0xff]
          %v1902 = vld [vmem:[%s2] sm:$0x1]
          %v1904 = vperm.slane %v1902, 0
          %v1906 = vadd.f32 %v1894, %v1904
          %v1907 = vadd.f32 %v1895, %v1904
          %v1908 = vadd.f32 %v1896, %v1904
          %v1909 = vadd.f32 %v1897, %v1904
          %v1910 = vadd.f32 %v1898, %v1904
          %v1911 = vadd.f32 %v1899, %v1904
          %v1912 = vadd.f32 %v1900, %v1904
          %v1913 = vadd.f32 %v1901, %v1904
          %v1914 = vld [vmem:[%s304] sm:$0xf]
          %v1915 = vld [vmem:[%s304 + $0x4] sm:$0xf]
          %v1916 = vld [vmem:[%s304 + $0x8] sm:$0xf]
          %v1917 = vld [vmem:[%s304 + $0xc] sm:$0xf]
          %v1918 = vld [vmem:[%s304 + $0x10] sm:$0xf]
          %v1919 = vld [vmem:[%s304 + $0x14] sm:$0xf]
          %v1920 = vld [vmem:[%s304 + $0x18] sm:$0xf]
          %v1921 = vld [vmem:[%s304 + $0x1c] sm:$0xf]
          %v1922 = vunpack.c.l.bf16 %v1914
          %v1923 = vunpack.c.l.bf16 %v1915
          %v1924 = vunpack.c.l.bf16 %v1916
          %v1925 = vunpack.c.l.bf16 %v1917
          %v1926 = vunpack.c.l.bf16 %v1918
          %v1927 = vunpack.c.l.bf16 %v1919
          %v1928 = vunpack.c.l.bf16 %v1920
          %v1929 = vunpack.c.l.bf16 %v1921
          %v1930 = vadd.f32 %v1906, %v1922
          %v1931 = vadd.f32 %v1907, %v1923
          %v1932 = vadd.f32 %v1908, %v1924
          %v1933 = vadd.f32 %v1909, %v1925
          %v1934 = vadd.f32 %v1910, %v1926
          %v1935 = vadd.f32 %v1911, %v1927
          %v1936 = vadd.f32 %v1912, %v1928
          %v1937 = vadd.f32 %v1913, %v1929
          %vm1938 = vcmask 130048
          %v1939 = vsel %vm1938, %v1930, 0.0
          %v1940 = vsel %vm1938, %v1931, 0.0
          %v1941 = vadd.f32 %v1939, %v1940
          %v1942 = vsel %vm1938, %v1932, 0.0
          %v1943 = vadd.f32 %v1941, %v1942
          %v1944 = vsel %vm1938, %v1933, 0.0
          %v1945 = vadd.f32 %v1943, %v1944
          %v1946 = vsel %vm1938, %v1934, 0.0
          %v1947 = vadd.f32 %v1945, %v1946
          %v1948 = vsel %vm1938, %v1935, 0.0
          %v1949 = vadd.f32 %v1947, %v1948
          %v1950 = vsel %vm1938, %v1936, 0.0
          %v1951 = vadd.f32 %v1949, %v1950
          %v1952 = vsel %vm1938, %v1937, 0.0
          %v1953 = vadd.f32 %v1951, %v1952
          %v1954 = vrot.slane %v1953, 4
          %v1955 = vadd.f32 %v1953, %v1954
          %v1956 = vrot.slane %v1955, 2
          %v1957 = vadd.f32 %v1955, %v1956
          %v1958 = vrot.slane %v1957, 1
          %v1959 = vadd.f32 %v1957, %v1958
          %v1960 = vmul.f32 %v1930, %v1930
          %v1961 = vmul.f32 %v1931, %v1931
          %v1962 = vmul.f32 %v1932, %v1932
          %v1963 = vmul.f32 %v1933, %v1933
          %v1964 = vmul.f32 %v1934, %v1934
          %v1965 = vmul.f32 %v1935, %v1935
          %v1966 = vmul.f32 %v1936, %v1936
          %v1967 = vmul.f32 %v1937, %v1937
          %v1968 = vsel %vm1938, %v1960, 0.0
          %v1969 = vsel %vm1938, %v1961, 0.0
          %v1970 = vadd.f32 %v1968, %v1969
          %v1971 = vsel %vm1938, %v1962, 0.0
          %v1972 = vadd.f32 %v1970, %v1971
          %v1973 = vsel %vm1938, %v1963, 0.0
          %v1974 = vadd.f32 %v1972, %v1973
          %v1975 = vsel %vm1938, %v1964, 0.0
          %v1976 = vadd.f32 %v1974, %v1975
          %v1977 = vsel %vm1938, %v1965, 0.0
          %v1978 = vadd.f32 %v1976, %v1977
          %v1979 = vsel %vm1938, %v1966, 0.0
          %v1980 = vadd.f32 %v1978, %v1979
          %v1981 = vsel %vm1938, %v1967, 0.0
          %v1982 = vadd.f32 %v1980, %v1981
          %v1983 = vrot.slane %v1982, 4
          %v1984 = vadd.f32 %v1982, %v1983
          %v1985 = vrot.slane %v1984, 2
          %v1986 = vadd.f32 %v1984, %v1985
          %v1987 = vrot.slane %v1986, 1
          %v1988 = vadd.f32 %v1986, %v1987
          %vm1989 = vcmask 1040384
          %v1990 = vsel %vm1989, %v1959, %v1988
          %vm1991 = vcmask 123904
          %1992 = vst.msk [vmem:[%s282] sm:$0x3] %vm1991, %v1990
          %v1993 = vpack.c.bf16 %v1930, %v1930
          %v1994 = vpack.c.bf16 %v1931, %v1931
          %v1995 = vpack.c.bf16 %v1932, %v1932
          %v1996 = vpack.c.bf16 %v1933, %v1933
          %v1997 = vpack.c.bf16 %v1934, %v1934
          %v1998 = vpack.c.bf16 %v1935, %v1935
          %v1999 = vpack.c.bf16 %v1936, %v1936
          %v2000 = vpack.c.bf16 %v1937, %v1937
          %vm2001 = vcmask 125952
          %2002 = vst.msk [vmem:[%s309] sm:$0xf] %vm2001, %v1993
          %2003 = vst.msk [vmem:[%s309 + $0x4] sm:$0xf] %vm2001, %v1994
          %2004 = vst.msk [vmem:[%s309 + $0x8] sm:$0xf] %vm2001, %v1995
          %2005 = vst.msk [vmem:[%s309 + $0xc] sm:$0xf] %vm2001, %v1996
          %2006 = vst.msk [vmem:[%s309 + $0x10] sm:$0xf] %vm2001, %v1997
          %2007 = vst.msk [vmem:[%s309 + $0x14] sm:$0xf] %vm2001, %v1998
          %2008 = vst.msk [vmem:[%s309 + $0x18] sm:$0xf] %vm2001, %v1999
          %2009 = vst.msk [vmem:[%s309 + $0x1c] sm:$0xf] %vm2001, %v2000
        $region48: #{tpu_custom_call.1} parent=35 // pred_fallthru
          _
        %p2010 = scmp.lt.s32.totalorder %s24, 2
        %s2011 = scalar_select %p2010, %s24, 2
        %s2012 = smul.addr %s2011, 8
        %s2013 = smul.addr %s2012, 4
        %s2014 = scalar_lea.vmem %s4, %s2013
        %s2015 = sand.u32 %s172, 1
        %s2016 = scalar_lea.sflag [#allocation5], %s2015
        %s2017 = sand.u32 %s172, 1
        %s2018 = smul.addr %s2017, 2
        %s2019 = scalar_lea.vmem [#allocation4], %s2018
        // Predicated region
        $region49: #{tpu_custom_call.1} parent=35 // pred_check
          %p2020 = pneg %p156
        $region50: #{tpu_custom_call.1} parent=35 // pred_check_branch
          %2022 = sbr.rel (%p2020) target = $region52
        $region51: #{tpu_custom_call.1} parent=35 // pred_region
          _
        $region52: #{tpu_custom_call.1} parent=35 // pred_fallthru
          _
        // Predicated region
        $region53: #{tpu_custom_call.1} parent=35 // pred_check
          %p2023 = pneg %p182
        $region54: #{tpu_custom_call.1} parent=35 // pred_check_branch
          %2025 = sbr.rel (%p2023) target = $region56
        $region55: #{tpu_custom_call.1} parent=35 // pred_region
          %2027 = vsyncadd %s2016, 0
          %s2028 = smul.addr %s24, 2
          %s2029 = scalar_lea.hbm %s5, %s2028
          %s2031 = sshll.u32 %s2019, 4
          %s2032 = int_to_ptr.vmem [resolvable:$true] %s2031
          %s2033 = sshll.u32 %s2029, 4
          %s2034 = int_to_ptr.hbm [resolvable:$true] %s2033
          %2036 = dma.vmem_to_hbm [thread:$0]  %s2032, 32, %s2034, %s2016
        $region56: #{tpu_custom_call.1} parent=35 // pred_fallthru
          _
      $region36: #{tpu_custom_call.1} parent=5 // pred_fallthru
        _
      %p2037 = scmp.le.s32.totalorder 2, %s15
      // Predicated region
      $region57: #{tpu_custom_call.1} parent=5 // pred_check
        %p2038 = pneg %p2037
      $region58: #{tpu_custom_call.1} parent=5 // pred_check_branch
        %2040 = sbr.rel (%p2038) target = $region60
      $region59: #{tpu_custom_call.1} parent=5 // pred_region
        %s2041 = ssub.s32 %s15, 2
        // Predicated region
        $region61: #{tpu_custom_call.1} parent=59 // pred_check
          %p2042 = pneg %p162
        $region62: #{tpu_custom_call.1} parent=59 // pred_check_branch
          %2044 = sbr.rel (%p2042) target = $region64
        $region63: #{tpu_custom_call.1} parent=59 // pred_region
          %p2045 = scmp.lt.s32.totalorder %s26, 2
          %s2046 = scalar_select %p2045, %s26, 2
          %s2047 = smul.addr %s2046, 8
          %s2048 = smul.addr %s2047, 4
          %s2049 = scalar_lea.vmem %s4, %s2048
        $region64: #{tpu_custom_call.1} parent=59 // pred_fallthru
          _
        // Predicated region
        $region65: #{tpu_custom_call.1} parent=59 // pred_check
          %p2050 = pneg %p188
        $region66: #{tpu_custom_call.1} parent=59 // pred_check_branch
          %2052 = sbr.rel (%p2050) target = $region68
        $region67: #{tpu_custom_call.1} parent=59 // pred_region
          %s2053 = sand.u32 %s173, 1
          %s2054 = scalar_lea.sflag [#allocation5], %s2053
          %s2055 = sand.u32 %s173, 1
          %s2056 = smul.addr %s2055, 2
          %s2057 = scalar_lea.vmem [#allocation4], %s2056
          %2059 = dma.done %s2054, 32
        $region68: #{tpu_custom_call.1} parent=59 // pred_fallthru
          _
      $region60: #{tpu_custom_call.1} parent=5 // pred_fallthru
        _
    $region6: #{tpu_custom_call.1} parent=1 // loop_footer
      %s19 = sadd.s32 1, %s15
    $region7: #{tpu_custom_call.1} parent=1 // loop_footer_branch
      %14 = sbr.rel target = $region3
    $region8: #{tpu_custom_call.1} parent=1 // loop_exit
      _
    %2060 = vsyncpa [#allocation5], 1
    %s2061 = scalar_lea.sflag [#allocation5], 1
    %2062 = vsyncpa %s2061, 1

</llo_original>
